<compile_context>
chip_gen: v7x
topology: tpu7x:2x2x1
jax: 0.10.0
libtpu: 0.0.40
codegen_flags: <defaults>
</compile_context>

<pallas_src>
import jax
import jax.numpy as jnp
from jax.experimental import pallas as pl
from jax.experimental.pallas import tpu as pltpu


def _round_up(n, m):
    return ((n + m - 1) // m) * m


def _pick_tb(B):
    """Batch tile: ~8 grid steps (>=4 per v7x TC), clamped to [128, 2048] rows."""
    tb = pl.cdiv(B, 8)
    tb = max(128, min(2048, tb))
    tb = min(tb, _round_up(B, 16))
    return max(16, _round_up(tb, 16))


def mlp_kernel(x_ref, w1_ref, w2_ref, w3_ref, w4_ref, w5_ref, b_ref, out_ref):
    w_refs = (w1_ref, w2_ref, w3_ref, w4_ref, w5_ref)
    n_layers = len(w_refs)

    h = x_ref[...]                                   # (TB, input_dim) f32
    for i, w_ref in enumerate(w_refs):
        d = w_ref.shape[1]
        # bf16 MXU inputs, f32 accumulation.
        y = jnp.dot(h.astype(jnp.bfloat16), w_ref[...],
                    preferred_element_type=jnp.float32)
        y = y + b_ref[i:i + 1, :d]                   # lane-0-aligned bias row (VPU add)
        if i < n_layers - 1:
            h = jnp.maximum(y, 0.0)                  # ReLU; dropout = identity (eval)
        else:
            h = y                                    # fc5: raw logits

    # Numerically-stable, exactly-normalized softmax over classes (dim=1).
    m = jnp.max(h, axis=1, keepdims=True)
    e = jnp.exp(h - m)
    out_ref[...] = (e / jnp.sum(e, axis=1, keepdims=True)).astype(out_ref.dtype)


def prepare_params(params):
    """One-time prep: bf16 weights + lane-aligned (num_layers, 128) f32 bias pack."""
    weights = tuple(jnp.asarray(w, jnp.float32).astype(jnp.bfloat16) for w, _ in params)
    widths = [w.shape[1] for w, _ in params]
    lanes = _round_up(max(max(widths), 128), 128)
    rows = []
    for _, b in params:
        b = jnp.asarray(b, jnp.float32).reshape(1, -1)
        rows.append(jnp.pad(b, ((0, 0), (0, lanes - b.shape[1]))))
    bias_pack = jnp.concatenate(rows, axis=0)        # (num_layers, lanes), lane-0 aligned
    return weights, bias_pack


def mlp_forward(x, prepared, *, tb=None):
    """x: (B, input_dim) float32. prepared = prepare_params(params)."""
    weights, bias_pack = prepared
    B, input_dim = x.shape
    num_classes = weights[-1].shape[1]

    tb_ = _pick_tb(B) if tb is None else tb
    grid = (pl.cdiv(B, tb_),)

    const2 = lambda i: (0, 0)   # weights / bias pack: single VMEM-resident block

    flops = 2 * B * sum(int(w.shape[0]) * int(w.shape[1]) for w in weights)
    bytes_accessed = (B * input_dim * 4 + B * num_classes * 4
                      + sum(int(w.size) * 2 for w in weights)
                      + int(bias_pack.size) * 4)

    out = pl.pallas_call(
        mlp_kernel,
        out_shape=jax.ShapeDtypeStruct((B, num_classes), jnp.float32),
        grid=grid,
        in_specs=(
            [pl.BlockSpec((tb_, input_dim), lambda i: (i, 0))]
            + [pl.BlockSpec(w.shape, const2) for w in weights]
            + [pl.BlockSpec(bias_pack.shape, const2)]
        ),
        out_specs=pl.BlockSpec((tb_, num_classes), lambda i: (i, 0)),
        compiler_params=pltpu.CompilerParams(
            dimension_semantics=("parallel",),        # batch tiles across v7x's 2 TCs
            vmem_limit_bytes=32 * 1024 * 1024),       # headroom for large tiles on v5e
        cost_estimate=pl.CostEstimate(
            flops=flops,
            transcendentals=B * num_classes,
            bytes_accessed=bytes_accessed),
    )(x, *weights, bias_pack)
    return out


def init_params(key, input_dim, num_classes):
    """Deterministic init mimicking PyTorch nn.Linear (U(-1/sqrt(fan_in), +1/sqrt(fan_in)))."""
    dims = [input_dim, 128, 64, 32, 32, num_classes]
    params = []
    for i in range(len(dims) - 1):
        key, kw, kb = jax.random.split(key, 3)
        fan_in, fan_out = dims[i], dims[i + 1]
        bound = 1.0 / (fan_in ** 0.5)
        w = jax.random.uniform(kw, (fan_in, fan_out), jnp.float32, -bound, bound)
        b = jax.random.uniform(kb, (1, fan_out), jnp.float32, -bound, bound)
        params.append((w, b))
    return params


def reference_forward_f32(x, params):
    h = x
    for i, (w, b) in enumerate(params):
        h = h @ w + b
        if i < len(params) - 1:
            h = jnp.maximum(h, 0.0)
    return jax.nn.softmax(h, axis=1)


def reference_forward_bf16(x, params):
    # Mirrors the kernel's numerics: bf16 matmul inputs, f32 accumulation.
    h = x
    for i, (w, b) in enumerate(params):
        h = jnp.dot(h.astype(jnp.bfloat16), w.astype(jnp.bfloat16),
                    preferred_element_type=jnp.float32) + b
        if i < len(params) - 1:
            h = jnp.maximum(h, 0.0)
    return jax.nn.softmax(h, axis=1)


if __name__ == "__main__":
    input_dim = 32
    num_classes = 8
    batch = 500          # non-multiple of the tile: exercises cdiv grid + edge masking

    key = jax.random.PRNGKey(0)
    key, kx = jax.random.split(key)
    x = jax.random.normal(kx, (batch, input_dim), jnp.float32)
    params = init_params(key, input_dim, num_classes)

    prepared = prepare_params(params)     # one-time param prep (outside per-call path)
    fwd = jax.jit(lambda xs: mlp_forward(xs, prepared))

    out = jax.block_until_ready(fwd(x))

    ref_bf16 = reference_forward_bf16(x, params)   # numerics-matched reference
    ref_f32 = reference_forward_f32(x, params)     # full-precision reference

    assert out.shape == (batch, num_classes)
    assert jnp.allclose(out, ref_bf16, atol=5e-3, rtol=5e-3), "mismatch vs bf16-matched reference"
    assert jnp.allclose(out, ref_f32, atol=3e-2, rtol=3e-2), "mismatch vs f32 reference"
    assert jnp.allclose(jnp.sum(out, axis=1), 1.0, atol=1e-3), "softmax rows must sum to 1"

    print("KERNEL_OK")
</pallas_src>

<mosaic_0001>
module attributes {stable_mosaic.version = 11 : i64} {
  func.func @mlp_kernel(%arg0: i32, %arg1: memref<128x32xf32, #tpu.memory_space<vmem>>, %arg2: memref<32x128xbf16, #tpu.memory_space<vmem>>, %arg3: memref<128x64xbf16, #tpu.memory_space<vmem>>, %arg4: memref<64x32xbf16, #tpu.memory_space<vmem>>, %arg5: memref<32x32xbf16, #tpu.memory_space<vmem>>, %arg6: memref<32x8xbf16, #tpu.memory_space<vmem>>, %arg7: memref<5x128xf32, #tpu.memory_space<vmem>>, %arg8: memref<128x8xf32, #tpu.memory_space<vmem>>) attributes {dimension_semantics = [#tpu.dimension_semantics<parallel>], iteration_bounds = array<i64: 4>, scalar_prefetch = 0 : i64, scratch_operands = 0 : i64, tpu.core_type = #tpu.core_type<tc>, window_params = [{transform_indices = @transform_0, window_bounds = array<i64: 128, 32>}, {pipeline_mode = #tpu.pipeline_mode<synchronous>, transform_indices = @transform_1, window_bounds = array<i64: 32, 128>}, {pipeline_mode = #tpu.pipeline_mode<synchronous>, transform_indices = @transform_2, window_bounds = array<i64: 128, 64>}, {pipeline_mode = #tpu.pipeline_mode<synchronous>, transform_indices = @transform_3, window_bounds = array<i64: 64, 32>}, {pipeline_mode = #tpu.pipeline_mode<synchronous>, transform_indices = @transform_4, window_bounds = array<i64: 32, 32>}, {pipeline_mode = #tpu.pipeline_mode<synchronous>, transform_indices = @transform_5, window_bounds = array<i64: 32, 8>}, {pipeline_mode = #tpu.pipeline_mode<synchronous>, transform_indices = @transform_6, window_bounds = array<i64: 5, 128>}, {transform_indices = @transform_7, window_bounds = array<i64: 128, 8>}]} {
    %c0 = arith.constant 0 : index
    %c0_0 = arith.constant 0 : index
    %0 = vector.load %arg1[%c0, %c0_0] : memref<128x32xf32, #tpu.memory_space<vmem>>, vector<128x32xf32>
    %1 = arith.truncf %0 : vector<128x32xf32> to vector<128x32xbf16>
    %c0_1 = arith.constant 0 : index
    %c0_2 = arith.constant 0 : index
    %2 = vector.load %arg2[%c0_1, %c0_2] : memref<32x128xbf16, #tpu.memory_space<vmem>>, vector<32x128xbf16>
    %cst = arith.constant dense<0.000000e+00> : vector<128x128xf32>
    %3 = tpu.matmul %1, %2, %cst {dimension_numbers = #tpu.dot_dimension_numbers<[1], [0], [0], [1], [0, 0, 1, 1], [], []>} : vector<128x32xbf16>, vector<32x128xbf16>, vector<128x128xf32> -> vector<128x128xf32>
    %c0_3 = arith.constant 0 : index
    %c0_4 = arith.constant 0 : index
    %4 = vector.load %arg7[%c0_3, %c0_4] : memref<5x128xf32, #tpu.memory_space<vmem>>, vector<1x128xf32>
    %5 = vector.broadcast %4 : vector<1x128xf32> to vector<128x128xf32>
    %6 = arith.addf %3, %5 : vector<128x128xf32>
    %cst_5 = arith.constant 0.000000e+00 : f32
    %7 = vector.broadcast %cst_5 : f32 to vector<128x128xf32>
    %8 = arith.maximumf %6, %7 : vector<128x128xf32>
    %9 = arith.truncf %8 : vector<128x128xf32> to vector<128x128xbf16>
    %c0_6 = arith.constant 0 : index
    %c0_7 = arith.constant 0 : index
    %10 = vector.load %arg3[%c0_6, %c0_7] : memref<128x64xbf16, #tpu.memory_space<vmem>>, vector<128x64xbf16>
    %cst_8 = arith.constant dense<0.000000e+00> : vector<128x64xf32>
    %11 = tpu.matmul %9, %10, %cst_8 {dimension_numbers = #tpu.dot_dimension_numbers<[1], [0], [0], [1], [0, 0, 1, 1], [], []>} : vector<128x128xbf16>, vector<128x64xbf16>, vector<128x64xf32> -> vector<128x64xf32>
    %c1 = arith.constant 1 : index
    %c0_9 = arith.constant 0 : index
    %12 = vector.load %arg7[%c1, %c0_9] : memref<5x128xf32, #tpu.memory_space<vmem>>, vector<1x64xf32>
    %13 = vector.broadcast %12 : vector<1x64xf32> to vector<128x64xf32>
    %14 = arith.addf %11, %13 : vector<128x64xf32>
    %cst_10 = arith.constant 0.000000e+00 : f32
    %15 = vector.broadcast %cst_10 : f32 to vector<128x64xf32>
    %16 = arith.maximumf %14, %15 : vector<128x64xf32>
    %17 = arith.truncf %16 : vector<128x64xf32> to vector<128x64xbf16>
    %c0_11 = arith.constant 0 : index
    %c0_12 = arith.constant 0 : index
    %18 = vector.load %arg4[%c0_11, %c0_12] : memref<64x32xbf16, #tpu.memory_space<vmem>>, vector<64x32xbf16>
    %cst_13 = arith.constant dense<0.000000e+00> : vector<128x32xf32>
    %19 = tpu.matmul %17, %18, %cst_13 {dimension_numbers = #tpu.dot_dimension_numbers<[1], [0], [0], [1], [0, 0, 1, 1], [], []>} : vector<128x64xbf16>, vector<64x32xbf16>, vector<128x32xf32> -> vector<128x32xf32>
    %c2 = arith.constant 2 : index
    %c0_14 = arith.constant 0 : index
    %20 = vector.load %arg7[%c2, %c0_14] : memref<5x128xf32, #tpu.memory_space<vmem>>, vector<1x32xf32>
    %21 = vector.broadcast %20 : vector<1x32xf32> to vector<128x32xf32>
    %22 = arith.addf %19, %21 : vector<128x32xf32>
    %cst_15 = arith.constant 0.000000e+00 : f32
    %23 = vector.broadcast %cst_15 : f32 to vector<128x32xf32>
    %24 = arith.maximumf %22, %23 : vector<128x32xf32>
    %25 = arith.truncf %24 : vector<128x32xf32> to vector<128x32xbf16>
    %c0_16 = arith.constant 0 : index
    %c0_17 = arith.constant 0 : index
    %26 = vector.load %arg5[%c0_16, %c0_17] : memref<32x32xbf16, #tpu.memory_space<vmem>>, vector<32x32xbf16>
    %cst_18 = arith.constant dense<0.000000e+00> : vector<128x32xf32>
    %27 = tpu.matmul %25, %26, %cst_18 {dimension_numbers = #tpu.dot_dimension_numbers<[1], [0], [0], [1], [0, 0, 1, 1], [], []>} : vector<128x32xbf16>, vector<32x32xbf16>, vector<128x32xf32> -> vector<128x32xf32>
    %c3 = arith.constant 3 : index
    %c0_19 = arith.constant 0 : index
    %28 = vector.load %arg7[%c3, %c0_19] : memref<5x128xf32, #tpu.memory_space<vmem>>, vector<1x32xf32>
    %29 = vector.broadcast %28 : vector<1x32xf32> to vector<128x32xf32>
    %30 = arith.addf %27, %29 : vector<128x32xf32>
    %cst_20 = arith.constant 0.000000e+00 : f32
    %31 = vector.broadcast %cst_20 : f32 to vector<128x32xf32>
    %32 = arith.maximumf %30, %31 : vector<128x32xf32>
    %33 = arith.truncf %32 : vector<128x32xf32> to vector<128x32xbf16>
    %c0_21 = arith.constant 0 : index
    %c0_22 = arith.constant 0 : index
    %34 = vector.load %arg6[%c0_21, %c0_22] : memref<32x8xbf16, #tpu.memory_space<vmem>>, vector<32x8xbf16>
    %cst_23 = arith.constant dense<0.000000e+00> : vector<128x8xf32>
    %35 = tpu.matmul %33, %34, %cst_23 {dimension_numbers = #tpu.dot_dimension_numbers<[1], [0], [0], [1], [0, 0, 1, 1], [], []>} : vector<128x32xbf16>, vector<32x8xbf16>, vector<128x8xf32> -> vector<128x8xf32>
    %c4 = arith.constant 4 : index
    %c0_24 = arith.constant 0 : index
    %36 = vector.load %arg7[%c4, %c0_24] : memref<5x128xf32, #tpu.memory_space<vmem>>, vector<1x8xf32>
    %37 = vector.broadcast %36 : vector<1x8xf32> to vector<128x8xf32>
    %38 = arith.addf %35, %37 : vector<128x8xf32>
    %cst_25 = arith.constant dense<0xFF800000> : vector<128xf32>
    %39 = vector.multi_reduction <maximumf>, %38, %cst_25 [1] : vector<128x8xf32> to vector<128xf32>
    %40 = vector.shape_cast %39 : vector<128xf32> to vector<128x1xf32>
    %41 = vector.broadcast %40 : vector<128x1xf32> to vector<128x8xf32>
    %42 = arith.subf %38, %41 : vector<128x8xf32>
    %43 = math.exp %42 : vector<128x8xf32>
    %cst_26 = arith.constant dense<0.000000e+00> : vector<128xf32>
    %44 = vector.multi_reduction <add>, %43, %cst_26 [1] : vector<128x8xf32> to vector<128xf32>
    %45 = vector.shape_cast %44 : vector<128xf32> to vector<128x1xf32>
    %46 = vector.broadcast %45 : vector<128x1xf32> to vector<128x8xf32>
    %47 = arith.divf %43, %46 : vector<128x8xf32>
    %c0_27 = arith.constant 0 : index
    %c0_28 = arith.constant 0 : index
    %48 = vector.load %arg8[%c0_27, %c0_28] : memref<128x8xf32, #tpu.memory_space<vmem>>, vector<128x8xf32>
    tpu.vector_store %arg8[%c0_27, %c0_28], %47 {strides = array<i32>} : memref<128x8xf32, #tpu.memory_space<vmem>>, vector<128x8xf32>,
    return
  }
  func.func @transform_0(%arg0: i32) -> (i32, i32) {
    %c0_i32 = arith.constant 0 : i32
    %c0_i32_0 = arith.constant 0 : i32
    return %arg0, %c0_i32 : i32, i32
  }
  func.func @transform_1(%arg0: i32) -> (i32, i32) {
    %c0_i32 = arith.constant 0 : i32
    %c0_i32_0 = arith.constant 0 : i32
    %c0_i32_1 = arith.constant 0 : i32
    return %c0_i32, %c0_i32_0 : i32, i32
  }
  func.func @transform_2(%arg0: i32) -> (i32, i32) {
    %c0_i32 = arith.constant 0 : i32
    %c0_i32_0 = arith.constant 0 : i32
    %c0_i32_1 = arith.constant 0 : i32
    return %c0_i32, %c0_i32_0 : i32, i32
  }
  func.func @transform_3(%arg0: i32) -> (i32, i32) {
    %c0_i32 = arith.constant 0 : i32
    %c0_i32_0 = arith.constant 0 : i32
    %c0_i32_1 = arith.constant 0 : i32
    return %c0_i32, %c0_i32_0 : i32, i32
  }
  func.func @transform_4(%arg0: i32) -> (i32, i32) {
    %c0_i32 = arith.constant 0 : i32
    %c0_i32_0 = arith.constant 0 : i32
    %c0_i32_1 = arith.constant 0 : i32
    return %c0_i32, %c0_i32_0 : i32, i32
  }
  func.func @transform_5(%arg0: i32) -> (i32, i32) {
    %c0_i32 = arith.constant 0 : i32
    %c0_i32_0 = arith.constant 0 : i32
    %c0_i32_1 = arith.constant 0 : i32
    return %c0_i32, %c0_i32_0 : i32, i32
  }
  func.func @transform_6(%arg0: i32) -> (i32, i32) {
    %c0_i32 = arith.constant 0 : i32
    %c0_i32_0 = arith.constant 0 : i32
    %c0_i32_1 = arith.constant 0 : i32
    return %c0_i32, %c0_i32_0 : i32, i32
  }
  func.func @transform_7(%arg0: i32) -> (i32, i32) {
    %c0_i32 = arith.constant 0 : i32
    %c0_i32_0 = arith.constant 0 : i32
    return %arg0, %c0_i32 : i32, i32
  }
}

</mosaic_0001>

<llo_original>
// kernel: _lambda_.1
$region0: #{_lambda_.1}
  #allocation0 [shape = 'u32[]', space=smem, size = 0x4, offset = 0x4, fixed_abs, tag = 'smem constant byte address 0x4 - core index']
  #allocation1 [shape = 'u32[144,128]{1,0:T(1,128)}', space=vmem, size = 0x12000, scoped, tag = 'internal scratch']
  %s0 = inlined_call_operand.vmem [shape: f32[500,32], index: 0, kind: input, shape index: {}]
  %s1 = inlined_call_operand.vmem [shape: bf16[32,128], index: 1, kind: input, shape index: {}]
  %s2 = inlined_call_operand.vmem [shape: bf16[128,64], index: 2, kind: input, shape index: {}]
  %s3 = inlined_call_operand.vmem [shape: bf16[64,32], index: 3, kind: input, shape index: {}]
  %s4 = inlined_call_operand.vmem [shape: bf16[32,32], index: 4, kind: input, shape index: {}]
  %s5 = inlined_call_operand.vmem [shape: bf16[32,8], index: 5, kind: input, shape index: {}]
  %s6 = inlined_call_operand.vmem [shape: f32[5,128], index: 6, kind: input, shape index: {}]
  %s7 = inlined_call_operand.vmem [shape: f32[500,8], index: 7, kind: output, shape index: {}]
  %s8 = sld [smem:[#allocation0]]
  $region109: #{_lambda_.1} parent=0
    _
  %s10 = ssub.s32 1, %s8
  %s11 = scalar_select 0, %s10, %s8
  $region1: #{_lambda_.1} parent=0
    #allocation2 [shape = 'u8[131072]{0}', space=vmem, size = 0x20000, scoped, tag = 'output window, operand 0']
    loop: start=0, step=1, limit=6
    $region2: #{_lambda_.1} parent=1 // loop_pre_header
      _
    $region3: #{_lambda_.1} parent=1 // loop_header
      %s13 = sphi 0, %s17
      %p14 = scmp.ge.s32.totalorder %s13, 6
      %s23 = sphi 0, %s25
      %s26 = sphi 0, %s23
      %s27 = sphi 0, %s26
      %s43 = sphi 0, %s27
      %s47 = sphi 0, %s47
      %s49 = sphi 0, %s47
      %s50 = sphi 0, %s49
      %s64 = sphi 0, %s50
      %s68 = sphi 0, %s68
      %s70 = sphi 0, %s68
      %s71 = sphi 0, %s70
      %s85 = sphi 0, %s71
      %s89 = sphi 0, %s89
      %s91 = sphi 0, %s89
      %s92 = sphi 0, %s91
      %s106 = sphi 0, %s92
      %s110 = sphi 0, %s110
      %s112 = sphi 0, %s110
      %s113 = sphi 0, %s112
      %s127 = sphi 0, %s113
      %s131 = sphi 0, %s131
      %s133 = sphi 0, %s131
      %s134 = sphi 0, %s133
      %s148 = sphi 0, %s134
      %s152 = sphi 0, %s152
      %s154 = sphi 0, %s152
      %s155 = sphi 0, %s154
      %s169 = sphi 0, %s155
      %s175 = sphi 0, %s177
      %s178 = sphi 0, %s175
      %s179 = sphi 0, %s178
      %s195 = sphi 0, %s179
    $region4: #{_lambda_.1} parent=1 // loop_header_branch
      %16 = sbr.rel (%p14) target = $region8
    $region5: #{_lambda_.1} parent=1 // loop_body
      %s18 = ssub.s32 %s13, 1
      %s19 = ssub.s32 %s13, 2
      %s20 = sadd.s32 %s13, 1
      %s21 = ssub.s32 %s13, %s20
      %p22 = scmp.eq.s32.totalorder %s21, 0
      %s24 = sadd.s32 %s23, 1
      %s25 = scalar_select %p22, %s23, %s24
      %p28 = pneg %p22
      %p29 = scmp.eq.s32.totalorder %s13, 3
      %p30 = por %p28, %p29
      %p31 = scmp.ne.s32.totalorder %s23, %s26
      %p32 = scmp.eq.s32.totalorder %s13, 0
      %p33 = por %p31, %p32
      %p34 = scmp.ne.s32.totalorder %s23, %s26
      %p35 = scmp.eq.s32.totalorder %s18, 3
      %p36 = por %p34, %p35
      %p37 = scmp.ne.s32.totalorder %s26, %s27
      %p38 = scmp.eq.s32.totalorder %s18, 0
      %p39 = por %p37, %p38
      %p40 = scmp.ne.s32.totalorder %s26, %s27
      %p41 = scmp.eq.s32.totalorder %s19, 3
      %p42 = por %p40, %p41
      %p44 = scmp.ne.s32.totalorder %s27, %s43
      %p45 = scmp.eq.s32.totalorder %s19, 0
      %p46 = por %p44, %p45
      %s48 = sadd.s32 %s47, 1
      %p51 = scmp.eq.s32.totalorder %s13, 3
      %p52 = scmp.ne.s32.totalorder %s47, %s49
      %p53 = scmp.eq.s32.totalorder %s13, 0
      %p54 = por %p52, %p53
      %p55 = scmp.ne.s32.totalorder %s47, %s49
      %p56 = scmp.eq.s32.totalorder %s18, 3
      %p57 = por %p55, %p56
      %p58 = scmp.ne.s32.totalorder %s49, %s50
      %p59 = scmp.eq.s32.totalorder %s18, 0
      %p60 = por %p58, %p59
      %p61 = scmp.ne.s32.totalorder %s49, %s50
      %p62 = scmp.eq.s32.totalorder %s19, 3
      %p63 = por %p61, %p62
      %p65 = scmp.ne.s32.totalorder %s50, %s64
      %p66 = scmp.eq.s32.totalorder %s19, 0
      %p67 = por %p65, %p66
      %s69 = sadd.s32 %s68, 1
      %p72 = scmp.eq.s32.totalorder %s13, 3
      %p73 = scmp.ne.s32.totalorder %s68, %s70
      %p74 = scmp.eq.s32.totalorder %s13, 0
      %p75 = por %p73, %p74
      %p76 = scmp.ne.s32.totalorder %s68, %s70
      %p77 = scmp.eq.s32.totalorder %s18, 3
      %p78 = por %p76, %p77
      %p79 = scmp.ne.s32.totalorder %s70, %s71
      %p80 = scmp.eq.s32.totalorder %s18, 0
      %p81 = por %p79, %p80
      %p82 = scmp.ne.s32.totalorder %s70, %s71
      %p83 = scmp.eq.s32.totalorder %s19, 3
      %p84 = por %p82, %p83
      %p86 = scmp.ne.s32.totalorder %s71, %s85
      %p87 = scmp.eq.s32.totalorder %s19, 0
      %p88 = por %p86, %p87
      %s90 = sadd.s32 %s89, 1
      %p93 = scmp.eq.s32.totalorder %s13, 3
      %p94 = scmp.ne.s32.totalorder %s89, %s91
      %p95 = scmp.eq.s32.totalorder %s13, 0
      %p96 = por %p94, %p95
      %p97 = scmp.ne.s32.totalorder %s89, %s91
      %p98 = scmp.eq.s32.totalorder %s18, 3
      %p99 = por %p97, %p98
      %p100 = scmp.ne.s32.totalorder %s91, %s92
      %p101 = scmp.eq.s32.totalorder %s18, 0
      %p102 = por %p100, %p101
      %p103 = scmp.ne.s32.totalorder %s91, %s92
      %p104 = scmp.eq.s32.totalorder %s19, 3
      %p105 = por %p103, %p104
      %p107 = scmp.ne.s32.totalorder %s92, %s106
      %p108 = scmp.eq.s32.totalorder %s19, 0
      %p109 = por %p107, %p108
      %s111 = sadd.s32 %s110, 1
      %p114 = scmp.eq.s32.totalorder %s13, 3
      %p115 = scmp.ne.s32.totalorder %s110, %s112
      %p116 = scmp.eq.s32.totalorder %s13, 0
      %p117 = por %p115, %p116
      %p118 = scmp.ne.s32.totalorder %s110, %s112
      %p119 = scmp.eq.s32.totalorder %s18, 3
      %p120 = por %p118, %p119
      %p121 = scmp.ne.s32.totalorder %s112, %s113
      %p122 = scmp.eq.s32.totalorder %s18, 0
      %p123 = por %p121, %p122
      %p124 = scmp.ne.s32.totalorder %s112, %s113
      %p125 = scmp.eq.s32.totalorder %s19, 3
      %p126 = por %p124, %p125
      %p128 = scmp.ne.s32.totalorder %s113, %s127
      %p129 = scmp.eq.s32.totalorder %s19, 0
      %p130 = por %p128, %p129
      %s132 = sadd.s32 %s131, 1
      %p135 = scmp.eq.s32.totalorder %s13, 3
      %p136 = scmp.ne.s32.totalorder %s131, %s133
      %p137 = scmp.eq.s32.totalorder %s13, 0
      %p138 = por %p136, %p137
      %p139 = scmp.ne.s32.totalorder %s131, %s133
      %p140 = scmp.eq.s32.totalorder %s18, 3
      %p141 = por %p139, %p140
      %p142 = scmp.ne.s32.totalorder %s133, %s134
      %p143 = scmp.eq.s32.totalorder %s18, 0
      %p144 = por %p142, %p143
      %p145 = scmp.ne.s32.totalorder %s133, %s134
      %p146 = scmp.eq.s32.totalorder %s19, 3
      %p147 = por %p145, %p146
      %p149 = scmp.ne.s32.totalorder %s134, %s148
      %p150 = scmp.eq.s32.totalorder %s19, 0
      %p151 = por %p149, %p150
      %s153 = sadd.s32 %s152, 1
      %p156 = scmp.eq.s32.totalorder %s13, 3
      %p157 = scmp.ne.s32.totalorder %s152, %s154
      %p158 = scmp.eq.s32.totalorder %s13, 0
      %p159 = por %p157, %p158
      %p160 = scmp.ne.s32.totalorder %s152, %s154
      %p161 = scmp.eq.s32.totalorder %s18, 3
      %p162 = por %p160, %p161
      %p163 = scmp.ne.s32.totalorder %s154, %s155
      %p164 = scmp.eq.s32.totalorder %s18, 0
      %p165 = por %p163, %p164
      %p166 = scmp.ne.s32.totalorder %s154, %s155
      %p167 = scmp.eq.s32.totalorder %s19, 3
      %p168 = por %p166, %p167
      %p170 = scmp.ne.s32.totalorder %s155, %s169
      %p171 = scmp.eq.s32.totalorder %s19, 0
      %p172 = por %p170, %p171
      %s173 = ssub.s32 %s13, %s20
      %p174 = scmp.eq.s32.totalorder %s173, 0
      %s176 = sadd.s32 %s175, 1
      %s177 = scalar_select %p174, %s175, %s176
      %p180 = pneg %p174
      %p181 = scmp.eq.s32.totalorder %s13, 3
      %p182 = por %p180, %p181
      %p183 = scmp.ne.s32.totalorder %s175, %s178
      %p184 = scmp.eq.s32.totalorder %s13, 0
      %p185 = por %p183, %p184
      %p186 = scmp.ne.s32.totalorder %s175, %s178
      %p187 = scmp.eq.s32.totalorder %s18, 3
      %p188 = por %p186, %p187
      %p189 = scmp.ne.s32.totalorder %s178, %s179
      %p190 = scmp.eq.s32.totalorder %s18, 0
      %p191 = por %p189, %p190
      %p192 = scmp.ne.s32.totalorder %s178, %s179
      %p193 = scmp.eq.s32.totalorder %s19, 3
      %p194 = por %p192, %p193
      %p196 = scmp.ne.s32.totalorder %s179, %s195
      %p197 = scmp.eq.s32.totalorder %s19, 0
      %p198 = por %p196, %p197
      %p199 = scmp.le.s32.totalorder 1, %s13
      %p200 = scmp.lt.s32.totalorder %s13, 5
      %p201 = pnand %p199, %p200
      %p202 = pneg %p201
      // Predicated region
      $region9: #{_lambda_.1} parent=5 // pred_check
        _
      $region10: #{_lambda_.1} parent=5 // pred_check_branch
        %204 = sbr.rel (%p201) target = $region12
      $region11: #{_lambda_.1} parent=5 // pred_region
        %s205 = ssub.s32 %s13, 1
        // Predicated region
        $region13: #{_lambda_.1} parent=11 // pred_check
          %p206 = pneg %p60
        $region14: #{_lambda_.1} parent=11 // pred_check_branch
          %208 = sbr.rel (%p206) target = $region16
        $region15: #{_lambda_.1} parent=11 // pred_region
          _
        $region16: #{_lambda_.1} parent=11 // pred_fallthru
          _
        // Predicated region
        $region17: #{_lambda_.1} parent=11 // pred_check
          %p209 = pneg %p81
        $region18: #{_lambda_.1} parent=11 // pred_check_branch
          %211 = sbr.rel (%p209) target = $region20
        $region19: #{_lambda_.1} parent=11 // pred_region
          _
        $region20: #{_lambda_.1} parent=11 // pred_fallthru
          _
        // Predicated region
        $region21: #{_lambda_.1} parent=11 // pred_check
          %p212 = pneg %p102
        $region22: #{_lambda_.1} parent=11 // pred_check_branch
          %214 = sbr.rel (%p212) target = $region24
        $region23: #{_lambda_.1} parent=11 // pred_region
          _
        $region24: #{_lambda_.1} parent=11 // pred_fallthru
          _
        // Predicated region
        $region25: #{_lambda_.1} parent=11 // pred_check
          %p215 = pneg %p123
        $region26: #{_lambda_.1} parent=11 // pred_check_branch
          %217 = sbr.rel (%p215) target = $region28
        $region27: #{_lambda_.1} parent=11 // pred_region
          _
        $region28: #{_lambda_.1} parent=11 // pred_fallthru
          _
        // Predicated region
        $region29: #{_lambda_.1} parent=11 // pred_check
          %p218 = pneg %p144
        $region30: #{_lambda_.1} parent=11 // pred_check_branch
          %220 = sbr.rel (%p218) target = $region32
        $region31: #{_lambda_.1} parent=11 // pred_region
          _
        $region32: #{_lambda_.1} parent=11 // pred_fallthru
          _
        // Predicated region
        $region33: #{_lambda_.1} parent=11 // pred_check
          %p221 = pneg %p165
        $region34: #{_lambda_.1} parent=11 // pred_check_branch
          %223 = sbr.rel (%p221) target = $region36
        $region35: #{_lambda_.1} parent=11 // pred_region
          _
        $region36: #{_lambda_.1} parent=11 // pred_fallthru
          _
      $region12: #{_lambda_.1} parent=5 // pred_fallthru
        _
      %p224 = scmp.lt.s32.totalorder %s13, 4
      // Predicated region
      $region37: #{_lambda_.1} parent=5 // pred_check
        %p225 = pneg %p224
      $region38: #{_lambda_.1} parent=5 // pred_check_branch
        %227 = sbr.rel (%p225) target = $region40
      $region39: #{_lambda_.1} parent=5 // pred_region
        // Predicated region
        $region41: #{_lambda_.1} parent=39 // pred_check
          %p228 = pneg %p33
        $region42: #{_lambda_.1} parent=39 // pred_check_branch
          %230 = sbr.rel (%p228) target = $region44
        $region43: #{_lambda_.1} parent=39 // pred_region
          %s231 = smul.u32 16, %s13
          %s232 = ssub.s32 63, %s231
          %p233 = scmp.lt.s32.totalorder %s232, 16
          %s234 = scalar_select %p233, %s232, 16
          %s235 = smul.u32 128, %s234
          %p236 = scmp.lt.s32.totalorder %s231, 62
          %s237 = scalar_select %p236, %s231, 62
          %s238 = smul.addr %s237, 8
          %s239 = scalar_lea.vmem %s0, %s238
          %s240 = smul.u32 16, %s13
          %s241 = ssub.s32 63, %s240
          %p242 = scmp.lt.s32.totalorder %s241, 16
          %s243 = scalar_select %p242, %s241, 16
          %s244 = smul.u32 128, %s243
        $region44: #{_lambda_.1} parent=39 // pred_fallthru
          _
      $region40: #{_lambda_.1} parent=5 // pred_fallthru
        _
      %p245 = scmp.le.s32.totalorder 1, %s13
      %p246 = scmp.lt.s32.totalorder %s13, 5
      %p247 = pnand %p245, %p246
      %p248 = pneg %p247
      // Predicated region
      $region45: #{_lambda_.1} parent=5 // pred_check
        _
      $region46: #{_lambda_.1} parent=5 // pred_check_branch
        %250 = sbr.rel (%p247) target = $region48
      $region47: #{_lambda_.1} parent=5 // pred_region
        %s251 = ssub.s32 %s13, 1
        %s252 = smul.u32 16, %s18
        %s253 = ssub.s32 63, %s252
        %p254 = scmp.lt.s32.totalorder %s253, 16
        %s255 = scalar_select %p254, %s253, 16
        %s256 = smul.u32 128, %s255
        %p257 = scmp.lt.s32.totalorder %s252, 62
        %s258 = scalar_select %p257, %s252, 62
        %s259 = smul.addr %s258, 8
        %s260 = scalar_lea.vmem %s0, %s259
        %p261 = pneg %p39
        %p262 = pneg %p36
        %p263 = pneg %p60
        %p264 = pneg %p57
        %p265 = pneg %p81
        %p266 = pneg %p78
        %p267 = pneg %p102
        %p268 = pneg %p99
        %p269 = pneg %p123
        %p270 = pneg %p120
        %p271 = pneg %p144
        %p272 = pneg %p141
        %p273 = pneg %p165
        %p274 = pneg %p162
        %p275 = pneg %p191
        %p276 = pneg %p188
        %s277 = sand.u32 %s178, 1
        %s278 = sand.u32 %s178, 1
        %s279 = smul.addr %s278, 128
        %s280 = scalar_lea.vmem [#allocation2], %s279
        %s281 = smul.u32 16, %s18
        %s282 = ssub.s32 63, %s281
        %p283 = scmp.lt.s32.totalorder %s282, 16
        %s284 = scalar_select %p283, %s282, 16
        %s285 = smul.u32 128, %s284
        %p286 = scmp.lt.s32.totalorder %s281, 62
        %s287 = scalar_select %p286, %s281, 62
        %s288 = smul.addr %s287, 8
        %s289 = scalar_lea.vmem %s0, %s288
        %s290 = smul.u32 16, %s18
        %s291 = ssub.s32 63, %s290
        %p292 = scmp.lt.s32.totalorder %s291, 16
        %s293 = scalar_select %p292, %s291, 16
        %s294 = smul.u32 128, %s293
        %s295 = smul.u32 16, %s18
        %s296 = ssub.s32 63, %s295
        %p297 = scmp.lt.s32.totalorder %s296, 16
        %s298 = scalar_select %p297, %s296, 16
        %s299 = smul.u32 128, %s298
        %v301 = vld [vmem:[%s289] sm:$0xff]
        %v302 = vld [vmem:[%s289 + $0x8] sm:$0xff]
        %v303 = vld [vmem:[%s289 + $0x10] sm:$0xff]
        %v304 = vld [vmem:[%s289 + $0x18] sm:$0xff]
        %v305 = vld [vmem:[%s289 + $0x20] sm:$0xff]
        %v306 = vld [vmem:[%s289 + $0x28] sm:$0xff]
        %v307 = vld [vmem:[%s289 + $0x30] sm:$0xff]
        %v308 = vld [vmem:[%s289 + $0x38] sm:$0xff]
        %v309 = vld [vmem:[%s289 + $0x40] sm:$0xff]
        %v310 = vld [vmem:[%s289 + $0x48] sm:$0xff]
        %v311 = vld [vmem:[%s289 + $0x50] sm:$0xff]
        %v312 = vld [vmem:[%s289 + $0x58] sm:$0xff]
        %v313 = vld [vmem:[%s289 + $0x60] sm:$0xff]
        %v314 = vld [vmem:[%s289 + $0x68] sm:$0xff]
        %v315 = vld [vmem:[%s289 + $0x70] sm:$0xff]
        %v316 = vld [vmem:[%s289 + $0x78] sm:$0xff]
        %v317 = vpack.c.bf16 %v302, %v301
        %v318 = vpack.c.bf16 %v304, %v303
        %v319 = vpack.c.bf16 %v306, %v305
        %v320 = vpack.c.bf16 %v308, %v307
        %v321 = vpack.c.bf16 %v310, %v309
        %v322 = vpack.c.bf16 %v312, %v311
        %v323 = vpack.c.bf16 %v314, %v313
        %v324 = vpack.c.bf16 %v316, %v315
        %v325 = vld [vmem:[%s1] sm:$0xf]
        %v326 = vld [vmem:[%s1 + $0x4] sm:$0xf]
        %v327 = vld [vmem:[%s1 + $0x8] sm:$0xf]
        %v328 = vld [vmem:[%s1 + $0xc] sm:$0xf]
        %v329 = vld [vmem:[%s6] sm:$0x1]
        %v330 = vlaneseq
        %v331 = vshrl.u32 %v330, 7
        %v332 = vsub.s32 0, %v331
        %v333 = vrot.slane %v329, %v332
        %v338 = vunpack.c.l.b16 %v325
        %v339 = vunpack.c.l.b16 %v326
        %v340 = vunpack.c.l.b16 %v327
        %v341 = vunpack.c.l.b16 %v328
        %v342 = vpack.c.b16 %v339, %v338
        %v343 = vpack.c.b16 %v341, %v340
        %vm346 = vcmask 261120
        %v348 = vsel %vm346, %v317, 0
        %v351 = vsel %vm346, %v318, 0
        %v354 = vsel %vm346, %v319, 0
        %v357 = vsel %vm346, %v320, 0
        %v360 = vsel %vm346, %v321, 0
        %v363 = vsel %vm346, %v322, 0
        %v366 = vsel %vm346, %v323, 0
        %v369 = vsel %vm346, %v324, 0
        %371 = vmatprep.subr.bf16.mxu0 0
        %372 = vmatpush1.bf16.msra.mxu0 %v342
        %373 = vmatprep.subr.bf16.mxu0 0
        %374 = vmatpush1.bf16.msra.mxu0 %v343
        %375 = vmatprep.subr.bf16.mxu0 0
        %376 = vmatpush1.bf16.msra.mxu0 0
        %377 = vmatprep.subr.bf16.mxu0 0
        %378 = vmatpush1.bf16.msra.mxu0 0
        %379 = vmatprep.subr.bf16.mxu0 0
        %380 = vmatpush1.bf16.msra.mxu0 0
        %381 = vmatprep.subr.bf16.mxu0 0
        %382 = vmatpush1.bf16.msra.mxu0 0
        %383 = vmatprep.subr.bf16.mxu0 0
        %384 = vmatpush1.bf16.msra.mxu0 0
        %385 = vmatprep.subr.bf16.mxu0 0
        %386 = vmatpush1.bf16.msra.mxu0 0
        %387 = vmatprep.subr.bf16.mxu0 0
        %388 = vmatpush1.bf16.msra.mxu0 0
        %389 = vmatprep.subr.bf16.mxu0 0
        %390 = vmatpush1.bf16.msra.mxu0 0
        %391 = vmatprep.subr.bf16.mxu0 0
        %392 = vmatpush1.bf16.msra.mxu0 0
        %393 = vmatprep.subr.bf16.mxu0 0
        %394 = vmatpush1.bf16.msra.mxu0 0
        %395 = vmatprep.subr.bf16.mxu0 0
        %396 = vmatpush1.bf16.msra.mxu0 0
        %397 = vmatprep.subr.bf16.mxu0 0
        %398 = vmatpush1.bf16.msra.mxu0 0
        %399 = vmatprep.subr.bf16.mxu0 0
        %400 = vmatpush1.bf16.msra.mxu0 0
        %401 = vmatprep.subr.bf16.mxu0 0
        %402 = vmatpush1.bf16.msra.mxu0 0
        %403 = vmatprep.mubr.bf16.mxu0 0
        %404 = vmatmul.mubr.bf16.gmra.mrb[0].mxu0 %v348
        %v405 = vpop.f32.mrb[0].mxu0
        %v406 = vadd.f32 %v333, %v405
        %v407 = vpop.f32.mrb[0].mxu0
        %v408 = vpop.f32.mrb[0].mxu0
        %v409 = vadd.f32 %v333, %v408
        %v410 = vpop.f32.mrb[0].mxu0
        %411 = vmatprep.mubr.bf16.mxu0 0
        %412 = vmatmul.mubr.bf16.gmra.mrb[0].mxu0 %v351
        %v413 = vpop.f32.mrb[0].mxu0
        %v414 = vadd.f32 %v333, %v413
        %v415 = vpop.f32.mrb[0].mxu0
        %v416 = vpop.f32.mrb[0].mxu0
        %v417 = vadd.f32 %v333, %v416
        %v418 = vpop.f32.mrb[0].mxu0
        %419 = vmatprep.mubr.bf16.mxu0 0
        %420 = vmatmul.mubr.bf16.gmra.mrb[0].mxu0 %v354
        %v421 = vpop.f32.mrb[0].mxu0
        %v422 = vadd.f32 %v333, %v421
        %v423 = vpop.f32.mrb[0].mxu0
        %v424 = vpop.f32.mrb[0].mxu0
        %v425 = vadd.f32 %v333, %v424
        %v426 = vpop.f32.mrb[0].mxu0
        %427 = vmatprep.mubr.bf16.mxu0 0
        %428 = vmatmul.mubr.bf16.gmra.mrb[0].mxu0 %v357
        %v429 = vpop.f32.mrb[0].mxu0
        %v430 = vadd.f32 %v333, %v429
        %v431 = vpop.f32.mrb[0].mxu0
        %v432 = vpop.f32.mrb[0].mxu0
        %v433 = vadd.f32 %v333, %v432
        %v434 = vpop.f32.mrb[0].mxu0
        %435 = vmatprep.mubr.bf16.mxu0 0
        %436 = vmatmul.mubr.bf16.gmra.mrb[0].mxu0 %v360
        %v437 = vpop.f32.mrb[0].mxu0
        %v438 = vadd.f32 %v333, %v437
        %v439 = vpop.f32.mrb[0].mxu0
        %v440 = vpop.f32.mrb[0].mxu0
        %v441 = vadd.f32 %v333, %v440
        %v442 = vpop.f32.mrb[0].mxu0
        %443 = vmatprep.mubr.bf16.mxu0 0
        %444 = vmatmul.mubr.bf16.gmra.mrb[0].mxu0 %v363
        %v445 = vpop.f32.mrb[0].mxu0
        %v446 = vadd.f32 %v333, %v445
        %v447 = vpop.f32.mrb[0].mxu0
        %v448 = vpop.f32.mrb[0].mxu0
        %v449 = vadd.f32 %v333, %v448
        %v450 = vpop.f32.mrb[0].mxu0
        %451 = vmatprep.mubr.bf16.mxu0 0
        %452 = vmatmul.mubr.bf16.gmra.mrb[0].mxu0 %v366
        %v453 = vpop.f32.mrb[0].mxu0
        %v454 = vadd.f32 %v333, %v453
        %v455 = vpop.f32.mrb[0].mxu0
        %v456 = vpop.f32.mrb[0].mxu0
        %v457 = vadd.f32 %v333, %v456
        %v458 = vpop.f32.mrb[0].mxu0
        %459 = vmatprep.mubr.bf16.mxu0 0
        %460 = vmatmul.mubr.bf16.gmra.mrb[0].mxu0 %v369
        %v461 = vpop.f32.mrb[0].mxu0
        %v462 = vadd.f32 %v333, %v461
        %v463 = vpop.f32.mrb[0].mxu0
        %v464 = vpop.f32.mrb[0].mxu0
        %v465 = vadd.f32 %v333, %v464
        %v466 = vpop.f32.mrb[0].mxu0
        %467 = vdwg.mxu0
        %v468 = vmax.f32 %v406, 0.0
        %v469 = vmax.f32 %v409, 0.0
        %v470 = vmax.f32 %v414, 0.0
        %v471 = vmax.f32 %v417, 0.0
        %v472 = vmax.f32 %v422, 0.0
        %v473 = vmax.f32 %v425, 0.0
        %v474 = vmax.f32 %v430, 0.0
        %v475 = vmax.f32 %v433, 0.0
        %v476 = vmax.f32 %v438, 0.0
        %v477 = vmax.f32 %v441, 0.0
        %v478 = vmax.f32 %v446, 0.0
        %v479 = vmax.f32 %v449, 0.0
        %v480 = vmax.f32 %v454, 0.0
        %v481 = vmax.f32 %v457, 0.0
        %v482 = vmax.f32 %v462, 0.0
        %v483 = vmax.f32 %v465, 0.0
        %v484 = vpack.c.bf16 %v469, %v468
        %v485 = vpack.c.bf16 %v471, %v470
        %v486 = vpack.c.bf16 %v473, %v472
        %v487 = vpack.c.bf16 %v475, %v474
        %v488 = vpack.c.bf16 %v477, %v476
        %v489 = vpack.c.bf16 %v479, %v478
        %v490 = vpack.c.bf16 %v481, %v480
        %v491 = vpack.c.bf16 %v483, %v482
        %v492 = vld [vmem:[%s2] sm:$0xf]
        %v493 = vld [vmem:[%s2 + $0x4] sm:$0xf]
        %v494 = vld [vmem:[%s2 + $0x8] sm:$0xf]
        %v495 = vld [vmem:[%s2 + $0xc] sm:$0xf]
        %v496 = vld [vmem:[%s2 + $0x10] sm:$0xf]
        %v497 = vld [vmem:[%s2 + $0x14] sm:$0xf]
        %v498 = vld [vmem:[%s2 + $0x18] sm:$0xf]
        %v499 = vld [vmem:[%s2 + $0x1c] sm:$0xf]
        %v500 = vld [vmem:[%s2 + $0x20] sm:$0xf]
        %v501 = vld [vmem:[%s2 + $0x24] sm:$0xf]
        %v502 = vld [vmem:[%s2 + $0x28] sm:$0xf]
        %v503 = vld [vmem:[%s2 + $0x2c] sm:$0xf]
        %v504 = vld [vmem:[%s2 + $0x30] sm:$0xf]
        %v505 = vld [vmem:[%s2 + $0x34] sm:$0xf]
        %v506 = vld [vmem:[%s2 + $0x38] sm:$0xf]
        %v507 = vld [vmem:[%s2 + $0x3c] sm:$0xf]
        %v508 = vld [vmem:[%s6 + $0x1] sm:$0x1]
        %v509 = vlaneseq
        %v510 = vshrl.u32 %v509, 7
        %v511 = vsub.s32 0, %v510
        %v512 = vrot.slane %v508, %v511
        %v529 = vunpack.c.l.b16 %v492
        %v530 = vunpack.c.l.b16 %v493
        %v531 = vunpack.c.l.b16 %v494
        %v532 = vunpack.c.l.b16 %v495
        %v533 = vunpack.c.l.b16 %v496
        %v534 = vunpack.c.l.b16 %v497
        %v535 = vunpack.c.l.b16 %v498
        %v536 = vunpack.c.l.b16 %v499
        %v537 = vunpack.c.l.b16 %v500
        %v538 = vunpack.c.l.b16 %v501
        %v539 = vunpack.c.l.b16 %v502
        %v540 = vunpack.c.l.b16 %v503
        %v541 = vunpack.c.l.b16 %v504
        %v542 = vunpack.c.l.b16 %v505
        %v543 = vunpack.c.l.b16 %v506
        %v544 = vunpack.c.l.b16 %v507
        %v545 = vpack.c.b16 %v530, %v529
        %v546 = vpack.c.b16 %v532, %v531
        %v547 = vpack.c.b16 %v534, %v533
        %v548 = vpack.c.b16 %v536, %v535
        %v549 = vpack.c.b16 %v538, %v537
        %v550 = vpack.c.b16 %v540, %v539
        %v551 = vpack.c.b16 %v542, %v541
        %v552 = vpack.c.b16 %v544, %v543
        %561 = vmatprep.subr.bf16.mxu0 0
        %562 = vmatpush1.bf16.msra.mxu0 %v545
        %563 = vmatprep.subr.bf16.mxu0 0
        %564 = vmatpush1.bf16.msra.mxu0 %v546
        %565 = vmatprep.subr.bf16.mxu0 0
        %566 = vmatpush1.bf16.msra.mxu0 %v547
        %567 = vmatprep.subr.bf16.mxu0 0
        %568 = vmatpush1.bf16.msra.mxu0 %v548
        %569 = vmatprep.subr.bf16.mxu0 0
        %570 = vmatpush1.bf16.msra.mxu0 %v549
        %571 = vmatprep.subr.bf16.mxu0 0
        %572 = vmatpush1.bf16.msra.mxu0 %v550
        %573 = vmatprep.subr.bf16.mxu0 0
        %574 = vmatpush1.bf16.msra.mxu0 %v551
        %575 = vmatprep.subr.bf16.mxu0 0
        %576 = vmatpush1.bf16.msra.mxu0 %v552
        %577 = vmatprep.subr.bf16.mxu0 0
        %578 = vmatpush1.bf16.msra.mxu0 0
        %579 = vmatprep.subr.bf16.mxu0 0
        %580 = vmatpush1.bf16.msra.mxu0 0
        %581 = vmatprep.subr.bf16.mxu0 0
        %582 = vmatpush1.bf16.msra.mxu0 0
        %583 = vmatprep.subr.bf16.mxu0 0
        %584 = vmatpush1.bf16.msra.mxu0 0
        %585 = vmatprep.subr.bf16.mxu0 0
        %586 = vmatpush1.bf16.msra.mxu0 0
        %587 = vmatprep.subr.bf16.mxu0 0
        %588 = vmatpush1.bf16.msra.mxu0 0
        %589 = vmatprep.subr.bf16.mxu0 0
        %590 = vmatpush1.bf16.msra.mxu0 0
        %591 = vmatprep.subr.bf16.mxu0 0
        %592 = vmatpush1.bf16.msra.mxu0 0
        %593 = vmatprep.mubr.bf16.mxu0 0
        %594 = vmatmul.mubr.bf16.gmra.mrb[0].mxu0 %v484
        %v595 = vpop.f32.mrb[0].mxu0
        %v596 = vadd.f32 %v512, %v595
        %v597 = vpop.f32.mrb[0].mxu0
        %v598 = vpop.f32.mrb[0].mxu0
        %v599 = vadd.f32 %v512, %v598
        %v600 = vpop.f32.mrb[0].mxu0
        %601 = vmatprep.mubr.bf16.mxu0 0
        %602 = vmatmul.mubr.bf16.gmra.mrb[0].mxu0 %v485
        %v603 = vpop.f32.mrb[0].mxu0
        %v604 = vadd.f32 %v512, %v603
        %v605 = vpop.f32.mrb[0].mxu0
        %v606 = vpop.f32.mrb[0].mxu0
        %v607 = vadd.f32 %v512, %v606
        %v608 = vpop.f32.mrb[0].mxu0
        %609 = vmatprep.mubr.bf16.mxu0 0
        %610 = vmatmul.mubr.bf16.gmra.mrb[0].mxu0 %v486
        %v611 = vpop.f32.mrb[0].mxu0
        %v612 = vadd.f32 %v512, %v611
        %v613 = vpop.f32.mrb[0].mxu0
        %v614 = vpop.f32.mrb[0].mxu0
        %v615 = vadd.f32 %v512, %v614
        %v616 = vpop.f32.mrb[0].mxu0
        %617 = vmatprep.mubr.bf16.mxu0 0
        %618 = vmatmul.mubr.bf16.gmra.mrb[0].mxu0 %v487
        %v619 = vpop.f32.mrb[0].mxu0
        %v620 = vadd.f32 %v512, %v619
        %v621 = vpop.f32.mrb[0].mxu0
        %v622 = vpop.f32.mrb[0].mxu0
        %v623 = vadd.f32 %v512, %v622
        %v624 = vpop.f32.mrb[0].mxu0
        %625 = vmatprep.mubr.bf16.mxu0 0
        %626 = vmatmul.mubr.bf16.gmra.mrb[0].mxu0 %v488
        %v627 = vpop.f32.mrb[0].mxu0
        %v628 = vadd.f32 %v512, %v627
        %v629 = vpop.f32.mrb[0].mxu0
        %v630 = vpop.f32.mrb[0].mxu0
        %v631 = vadd.f32 %v512, %v630
        %v632 = vpop.f32.mrb[0].mxu0
        %633 = vmatprep.mubr.bf16.mxu0 0
        %634 = vmatmul.mubr.bf16.gmra.mrb[0].mxu0 %v489
        %v635 = vpop.f32.mrb[0].mxu0
        %v636 = vadd.f32 %v512, %v635
        %v637 = vpop.f32.mrb[0].mxu0
        %v638 = vpop.f32.mrb[0].mxu0
        %v639 = vadd.f32 %v512, %v638
        %v640 = vpop.f32.mrb[0].mxu0
        %641 = vmatprep.mubr.bf16.mxu0 0
        %642 = vmatmul.mubr.bf16.gmra.mrb[0].mxu0 %v490
        %v643 = vpop.f32.mrb[0].mxu0
        %v644 = vadd.f32 %v512, %v643
        %v645 = vpop.f32.mrb[0].mxu0
        %v646 = vpop.f32.mrb[0].mxu0
        %v647 = vadd.f32 %v512, %v646
        %v648 = vpop.f32.mrb[0].mxu0
        %649 = vmatprep.mubr.bf16.mxu0 0
        %650 = vmatmul.mubr.bf16.gmra.mrb[0].mxu0 %v491
        %v651 = vpop.f32.mrb[0].mxu0
        %v652 = vadd.f32 %v512, %v651
        %v653 = vpop.f32.mrb[0].mxu0
        %v654 = vpop.f32.mrb[0].mxu0
        %v655 = vadd.f32 %v512, %v654
        %v656 = vpop.f32.mrb[0].mxu0
        %657 = vdwg.mxu0
        %v658 = vmax.f32 %v596, 0.0
        %v659 = vmax.f32 %v599, 0.0
        %v660 = vmax.f32 %v604, 0.0
        %v661 = vmax.f32 %v607, 0.0
        %v662 = vmax.f32 %v612, 0.0
        %v663 = vmax.f32 %v615, 0.0
        %v664 = vmax.f32 %v620, 0.0
        %v665 = vmax.f32 %v623, 0.0
        %v666 = vmax.f32 %v628, 0.0
        %v667 = vmax.f32 %v631, 0.0
        %v668 = vmax.f32 %v636, 0.0
        %v669 = vmax.f32 %v639, 0.0
        %v670 = vmax.f32 %v644, 0.0
        %v671 = vmax.f32 %v647, 0.0
        %v672 = vmax.f32 %v652, 0.0
        %v673 = vmax.f32 %v655, 0.0
        %v674 = vpack.c.bf16 %v659, %v658
        %v675 = vpack.c.bf16 %v661, %v660
        %v676 = vpack.c.bf16 %v663, %v662
        %v677 = vpack.c.bf16 %v665, %v664
        %v678 = vpack.c.bf16 %v667, %v666
        %v679 = vpack.c.bf16 %v669, %v668
        %v680 = vpack.c.bf16 %v671, %v670
        %v681 = vpack.c.bf16 %v673, %v672
        %v682 = vld [vmem:[%s3] sm:$0xf]
        %v683 = vld [vmem:[%s3 + $0x4] sm:$0xf]
        %v684 = vld [vmem:[%s3 + $0x8] sm:$0xf]
        %v685 = vld [vmem:[%s3 + $0xc] sm:$0xf]
        %v686 = vld [vmem:[%s3 + $0x10] sm:$0xf]
        %v687 = vld [vmem:[%s3 + $0x14] sm:$0xf]
        %v688 = vld [vmem:[%s3 + $0x18] sm:$0xf]
        %v689 = vld [vmem:[%s3 + $0x1c] sm:$0xf]
        %v690 = vld [vmem:[%s6 + $0x2] sm:$0x1]
        %v691 = vlaneseq
        %v692 = vshrl.u32 %v691, 7
        %v693 = vsub.s32 0, %v692
        %v694 = vrot.slane %v690, %v693
        %v703 = vunpack.c.l.b16 %v682
        %v704 = vunpack.c.l.b16 %v683
        %v705 = vunpack.c.l.b16 %v684
        %v706 = vunpack.c.l.b16 %v685
        %v707 = vunpack.c.l.b16 %v686
        %v708 = vunpack.c.l.b16 %v687
        %v709 = vunpack.c.l.b16 %v688
        %v710 = vunpack.c.l.b16 %v689
        %v711 = vpack.c.b16 %v704, %v703
        %v712 = vpack.c.b16 %v706, %v705
        %v713 = vpack.c.b16 %v708, %v707
        %v714 = vpack.c.b16 %v710, %v709
        %vm719 = vcmask 523264
        %v721 = vsel %vm719, %v674, 0
        %v724 = vsel %vm719, %v675, 0
        %v727 = vsel %vm719, %v676, 0
        %v730 = vsel %vm719, %v677, 0
        %v733 = vsel %vm719, %v678, 0
        %v736 = vsel %vm719, %v679, 0
        %v739 = vsel %vm719, %v680, 0
        %v742 = vsel %vm719, %v681, 0
        %744 = vmatprep.subr.bf16.mxu0 0
        %745 = vmatpush1.bf16.msra.mxu0 %v711
        %746 = vmatprep.subr.bf16.mxu0 0
        %747 = vmatpush1.bf16.msra.mxu0 %v712
        %748 = vmatprep.subr.bf16.mxu0 0
        %749 = vmatpush1.bf16.msra.mxu0 %v713
        %750 = vmatprep.subr.bf16.mxu0 0
        %751 = vmatpush1.bf16.msra.mxu0 %v714
        %752 = vmatprep.subr.bf16.mxu0 0
        %753 = vmatpush1.bf16.msra.mxu0 0
        %754 = vmatprep.subr.bf16.mxu0 0
        %755 = vmatpush1.bf16.msra.mxu0 0
        %756 = vmatprep.subr.bf16.mxu0 0
        %757 = vmatpush1.bf16.msra.mxu0 0
        %758 = vmatprep.subr.bf16.mxu0 0
        %759 = vmatpush1.bf16.msra.mxu0 0
        %760 = vmatprep.subr.bf16.mxu0 0
        %761 = vmatpush1.bf16.msra.mxu0 0
        %762 = vmatprep.subr.bf16.mxu0 0
        %763 = vmatpush1.bf16.msra.mxu0 0
        %764 = vmatprep.subr.bf16.mxu0 0
        %765 = vmatpush1.bf16.msra.mxu0 0
        %766 = vmatprep.subr.bf16.mxu0 0
        %767 = vmatpush1.bf16.msra.mxu0 0
        %768 = vmatprep.subr.bf16.mxu0 0
        %769 = vmatpush1.bf16.msra.mxu0 0
        %770 = vmatprep.subr.bf16.mxu0 0
        %771 = vmatpush1.bf16.msra.mxu0 0
        %772 = vmatprep.subr.bf16.mxu0 0
        %773 = vmatpush1.bf16.msra.mxu0 0
        %774 = vmatprep.subr.bf16.mxu0 0
        %775 = vmatpush1.bf16.msra.mxu0 0
        %776 = vmatprep.mubr.bf16.mxu0 0
        %777 = vmatmul.mubr.bf16.gmra.mrb[0].mxu0 %v721
        %v778 = vpop.f32.mrb[0].mxu0
        %v779 = vadd.f32 %v694, %v778
        %v780 = vpop.f32.mrb[0].mxu0
        %v781 = vpop.f32.mrb[0].mxu0
        %v782 = vadd.f32 %v694, %v781
        %v783 = vpop.f32.mrb[0].mxu0
        %784 = vmatprep.mubr.bf16.mxu0 0
        %785 = vmatmul.mubr.bf16.gmra.mrb[0].mxu0 %v724
        %v786 = vpop.f32.mrb[0].mxu0
        %v787 = vadd.f32 %v694, %v786
        %v788 = vpop.f32.mrb[0].mxu0
        %v789 = vpop.f32.mrb[0].mxu0
        %v790 = vadd.f32 %v694, %v789
        %v791 = vpop.f32.mrb[0].mxu0
        %792 = vmatprep.mubr.bf16.mxu0 0
        %793 = vmatmul.mubr.bf16.gmra.mrb[0].mxu0 %v727
        %v794 = vpop.f32.mrb[0].mxu0
        %v795 = vadd.f32 %v694, %v794
        %v796 = vpop.f32.mrb[0].mxu0
        %v797 = vpop.f32.mrb[0].mxu0
        %v798 = vadd.f32 %v694, %v797
        %v799 = vpop.f32.mrb[0].mxu0
        %800 = vmatprep.mubr.bf16.mxu0 0
        %801 = vmatmul.mubr.bf16.gmra.mrb[0].mxu0 %v730
        %v802 = vpop.f32.mrb[0].mxu0
        %v803 = vadd.f32 %v694, %v802
        %v804 = vpop.f32.mrb[0].mxu0
        %v805 = vpop.f32.mrb[0].mxu0
        %v806 = vadd.f32 %v694, %v805
        %v807 = vpop.f32.mrb[0].mxu0
        %808 = vmatprep.mubr.bf16.mxu0 0
        %809 = vmatmul.mubr.bf16.gmra.mrb[0].mxu0 %v733
        %v810 = vpop.f32.mrb[0].mxu0
        %v811 = vadd.f32 %v694, %v810
        %v812 = vpop.f32.mrb[0].mxu0
        %v813 = vpop.f32.mrb[0].mxu0
        %v814 = vadd.f32 %v694, %v813
        %v815 = vpop.f32.mrb[0].mxu0
        %816 = vmatprep.mubr.bf16.mxu0 0
        %817 = vmatmul.mubr.bf16.gmra.mrb[0].mxu0 %v736
        %v818 = vpop.f32.mrb[0].mxu0
        %v819 = vadd.f32 %v694, %v818
        %v820 = vpop.f32.mrb[0].mxu0
        %v821 = vpop.f32.mrb[0].mxu0
        %v822 = vadd.f32 %v694, %v821
        %v823 = vpop.f32.mrb[0].mxu0
        %824 = vmatprep.mubr.bf16.mxu0 0
        %825 = vmatmul.mubr.bf16.gmra.mrb[0].mxu0 %v739
        %v826 = vpop.f32.mrb[0].mxu0
        %v827 = vadd.f32 %v694, %v826
        %v828 = vpop.f32.mrb[0].mxu0
        %v829 = vpop.f32.mrb[0].mxu0
        %v830 = vadd.f32 %v694, %v829
        %v831 = vpop.f32.mrb[0].mxu0
        %832 = vmatprep.mubr.bf16.mxu0 0
        %833 = vmatmul.mubr.bf16.gmra.mrb[0].mxu0 %v742
        %v834 = vpop.f32.mrb[0].mxu0
        %v835 = vadd.f32 %v694, %v834
        %v836 = vpop.f32.mrb[0].mxu0
        %v837 = vpop.f32.mrb[0].mxu0
        %v838 = vadd.f32 %v694, %v837
        %v839 = vpop.f32.mrb[0].mxu0
        %840 = vdwg.mxu0
        %v841 = vmax.f32 %v779, 0.0
        %v842 = vmax.f32 %v782, 0.0
        %v843 = vmax.f32 %v787, 0.0
        %v844 = vmax.f32 %v790, 0.0
        %v845 = vmax.f32 %v795, 0.0
        %v846 = vmax.f32 %v798, 0.0
        %v847 = vmax.f32 %v803, 0.0
        %v848 = vmax.f32 %v806, 0.0
        %v849 = vmax.f32 %v811, 0.0
        %v850 = vmax.f32 %v814, 0.0
        %v851 = vmax.f32 %v819, 0.0
        %v852 = vmax.f32 %v822, 0.0
        %v853 = vmax.f32 %v827, 0.0
        %v854 = vmax.f32 %v830, 0.0
        %v855 = vmax.f32 %v835, 0.0
        %v856 = vmax.f32 %v838, 0.0
        %v857 = vpack.c.bf16 %v842, %v841
        %v858 = vpack.c.bf16 %v844, %v843
        %v859 = vpack.c.bf16 %v846, %v845
        %v860 = vpack.c.bf16 %v848, %v847
        %v861 = vpack.c.bf16 %v850, %v849
        %v862 = vpack.c.bf16 %v852, %v851
        %v863 = vpack.c.bf16 %v854, %v853
        %v864 = vpack.c.bf16 %v856, %v855
        %v865 = vld [vmem:[%s4] sm:$0xf]
        %v866 = vld [vmem:[%s4 + $0x4] sm:$0xf]
        %v867 = vld [vmem:[%s4 + $0x8] sm:$0xf]
        %v868 = vld [vmem:[%s4 + $0xc] sm:$0xf]
        %v869 = vld [vmem:[%s6 + $0x3] sm:$0x1]
        %v870 = vlaneseq
        %v871 = vshrl.u32 %v870, 7
        %v872 = vsub.s32 0, %v871
        %v873 = vrot.slane %v869, %v872
        %v878 = vunpack.c.l.b16 %v865
        %v879 = vunpack.c.l.b16 %v866
        %v880 = vunpack.c.l.b16 %v867
        %v881 = vunpack.c.l.b16 %v868
        %v882 = vpack.c.b16 %v879, %v878
        %v883 = vpack.c.b16 %v881, %v880
        %v887 = vsel %vm346, %v857, 0
        %v890 = vsel %vm346, %v858, 0
        %v893 = vsel %vm346, %v859, 0
        %v896 = vsel %vm346, %v860, 0
        %v899 = vsel %vm346, %v861, 0
        %v902 = vsel %vm346, %v862, 0
        %v905 = vsel %vm346, %v863, 0
        %v908 = vsel %vm346, %v864, 0
        %910 = vmatprep.subr.bf16.mxu0 0
        %911 = vmatpush1.bf16.msra.mxu0 %v882
        %912 = vmatprep.subr.bf16.mxu0 0
        %913 = vmatpush1.bf16.msra.mxu0 %v883
        %914 = vmatprep.subr.bf16.mxu0 0
        %915 = vmatpush1.bf16.msra.mxu0 0
        %916 = vmatprep.subr.bf16.mxu0 0
        %917 = vmatpush1.bf16.msra.mxu0 0
        %918 = vmatprep.subr.bf16.mxu0 0
        %919 = vmatpush1.bf16.msra.mxu0 0
        %920 = vmatprep.subr.bf16.mxu0 0
        %921 = vmatpush1.bf16.msra.mxu0 0
        %922 = vmatprep.subr.bf16.mxu0 0
        %923 = vmatpush1.bf16.msra.mxu0 0
        %924 = vmatprep.subr.bf16.mxu0 0
        %925 = vmatpush1.bf16.msra.mxu0 0
        %926 = vmatprep.subr.bf16.mxu0 0
        %927 = vmatpush1.bf16.msra.mxu0 0
        %928 = vmatprep.subr.bf16.mxu0 0
        %929 = vmatpush1.bf16.msra.mxu0 0
        %930 = vmatprep.subr.bf16.mxu0 0
        %931 = vmatpush1.bf16.msra.mxu0 0
        %932 = vmatprep.subr.bf16.mxu0 0
        %933 = vmatpush1.bf16.msra.mxu0 0
        %934 = vmatprep.subr.bf16.mxu0 0
        %935 = vmatpush1.bf16.msra.mxu0 0
        %936 = vmatprep.subr.bf16.mxu0 0
        %937 = vmatpush1.bf16.msra.mxu0 0
        %938 = vmatprep.subr.bf16.mxu0 0
        %939 = vmatpush1.bf16.msra.mxu0 0
        %940 = vmatprep.subr.bf16.mxu0 0
        %941 = vmatpush1.bf16.msra.mxu0 0
        %942 = vmatprep.mubr.bf16.mxu0 0
        %943 = vmatmul.mubr.bf16.gmra.mrb[0].mxu0 %v887
        %v944 = vpop.f32.mrb[0].mxu0
        %v945 = vadd.f32 %v873, %v944
        %v946 = vpop.f32.mrb[0].mxu0
        %v947 = vpop.f32.mrb[0].mxu0
        %v948 = vadd.f32 %v873, %v947
        %v949 = vpop.f32.mrb[0].mxu0
        %950 = vmatprep.mubr.bf16.mxu0 0
        %951 = vmatmul.mubr.bf16.gmra.mrb[0].mxu0 %v890
        %v952 = vpop.f32.mrb[0].mxu0
        %v953 = vadd.f32 %v873, %v952
        %v954 = vpop.f32.mrb[0].mxu0
        %v955 = vpop.f32.mrb[0].mxu0
        %v956 = vadd.f32 %v873, %v955
        %v957 = vpop.f32.mrb[0].mxu0
        %958 = vmatprep.mubr.bf16.mxu0 0
        %959 = vmatmul.mubr.bf16.gmra.mrb[0].mxu0 %v893
        %v960 = vpop.f32.mrb[0].mxu0
        %v961 = vadd.f32 %v873, %v960
        %v962 = vpop.f32.mrb[0].mxu0
        %v963 = vpop.f32.mrb[0].mxu0
        %v964 = vadd.f32 %v873, %v963
        %v965 = vpop.f32.mrb[0].mxu0
        %966 = vmatprep.mubr.bf16.mxu0 0
        %967 = vmatmul.mubr.bf16.gmra.mrb[0].mxu0 %v896
        %v968 = vpop.f32.mrb[0].mxu0
        %v969 = vadd.f32 %v873, %v968
        %v970 = vpop.f32.mrb[0].mxu0
        %v971 = vpop.f32.mrb[0].mxu0
        %v972 = vadd.f32 %v873, %v971
        %v973 = vpop.f32.mrb[0].mxu0
        %974 = vmatprep.mubr.bf16.mxu0 0
        %975 = vmatmul.mubr.bf16.gmra.mrb[0].mxu0 %v899
        %v976 = vpop.f32.mrb[0].mxu0
        %v977 = vadd.f32 %v873, %v976
        %v978 = vpop.f32.mrb[0].mxu0
        %v979 = vpop.f32.mrb[0].mxu0
        %v980 = vadd.f32 %v873, %v979
        %v981 = vpop.f32.mrb[0].mxu0
        %982 = vmatprep.mubr.bf16.mxu0 0
        %983 = vmatmul.mubr.bf16.gmra.mrb[0].mxu0 %v902
        %v984 = vpop.f32.mrb[0].mxu0
        %v985 = vadd.f32 %v873, %v984
        %v986 = vpop.f32.mrb[0].mxu0
        %v987 = vpop.f32.mrb[0].mxu0
        %v988 = vadd.f32 %v873, %v987
        %v989 = vpop.f32.mrb[0].mxu0
        %990 = vmatprep.mubr.bf16.mxu0 0
        %991 = vmatmul.mubr.bf16.gmra.mrb[0].mxu0 %v905
        %v992 = vpop.f32.mrb[0].mxu0
        %v993 = vadd.f32 %v873, %v992
        %v994 = vpop.f32.mrb[0].mxu0
        %v995 = vpop.f32.mrb[0].mxu0
        %v996 = vadd.f32 %v873, %v995
        %v997 = vpop.f32.mrb[0].mxu0
        %998 = vmatprep.mubr.bf16.mxu0 0
        %999 = vmatmul.mubr.bf16.gmra.mrb[0].mxu0 %v908
        %v1000 = vpop.f32.mrb[0].mxu0
        %v1001 = vadd.f32 %v873, %v1000
        %v1002 = vpop.f32.mrb[0].mxu0
        %v1003 = vpop.f32.mrb[0].mxu0
        %v1004 = vadd.f32 %v873, %v1003
        %v1005 = vpop.f32.mrb[0].mxu0
        %1006 = vdwg.mxu0
        %v1007 = vmax.f32 %v945, 0.0
        %v1008 = vmax.f32 %v948, 0.0
        %v1009 = vmax.f32 %v953, 0.0
        %v1010 = vmax.f32 %v956, 0.0
        %v1011 = vmax.f32 %v961, 0.0
        %v1012 = vmax.f32 %v964, 0.0
        %v1013 = vmax.f32 %v969, 0.0
        %v1014 = vmax.f32 %v972, 0.0
        %v1015 = vmax.f32 %v977, 0.0
        %v1016 = vmax.f32 %v980, 0.0
        %v1017 = vmax.f32 %v985, 0.0
        %v1018 = vmax.f32 %v988, 0.0
        %v1019 = vmax.f32 %v993, 0.0
        %v1020 = vmax.f32 %v996, 0.0
        %v1021 = vmax.f32 %v1001, 0.0
        %v1022 = vmax.f32 %v1004, 0.0
        %v1023 = vpack.c.bf16 %v1008, %v1007
        %v1024 = vpack.c.bf16 %v1010, %v1009
        %v1025 = vpack.c.bf16 %v1012, %v1011
        %v1026 = vpack.c.bf16 %v1014, %v1013
        %v1027 = vpack.c.bf16 %v1016, %v1015
        %v1028 = vpack.c.bf16 %v1018, %v1017
        %v1029 = vpack.c.bf16 %v1020, %v1019
        %v1030 = vpack.c.bf16 %v1022, %v1021
        %v1031 = vld [vmem:[%s5] sm:$0xf]
        %v1032 = vld [vmem:[%s5 + $0x4] sm:$0xf]
        %v1033 = vld [vmem:[%s5 + $0x8] sm:$0xf]
        %v1034 = vld [vmem:[%s5 + $0xc] sm:$0xf]
        %v1035 = vld [vmem:[%s6 + $0x4] sm:$0x1]
        %v1036 = vlaneseq
        %v1037 = vshrl.u32 %v1036, 7
        %v1038 = vsub.s32 0, %v1037
        %v1039 = vrot.slane %v1035, %v1038
        %v1044 = vunpack.c.l.b16 %v1031
        %v1045 = vunpack.c.l.b16 %v1032
        %v1046 = vunpack.c.l.b16 %v1033
        %v1047 = vunpack.c.l.b16 %v1034
        %v1048 = vpack.c.b16 %v1045, %v1044
        %v1049 = vpack.c.b16 %v1047, %v1046
        %v1053 = vsel %vm346, %v1023, 0
        %v1056 = vsel %vm346, %v1024, 0
        %v1059 = vsel %vm346, %v1025, 0
        %v1062 = vsel %vm346, %v1026, 0
        %v1065 = vsel %vm346, %v1027, 0
        %v1068 = vsel %vm346, %v1028, 0
        %v1071 = vsel %vm346, %v1029, 0
        %v1074 = vsel %vm346, %v1030, 0
        %1076 = vmatprep.subr.bf16.mxu0 0
        %1077 = vmatpush1.bf16.msra.mxu0 %v1048
        %1078 = vmatprep.subr.bf16.mxu0 0
        %1079 = vmatpush1.bf16.msra.mxu0 %v1049
        %1080 = vmatprep.subr.bf16.mxu0 0
        %1081 = vmatpush1.bf16.msra.mxu0 0
        %1082 = vmatprep.subr.bf16.mxu0 0
        %1083 = vmatpush1.bf16.msra.mxu0 0
        %1084 = vmatprep.subr.bf16.mxu0 0
        %1085 = vmatpush1.bf16.msra.mxu0 0
        %1086 = vmatprep.subr.bf16.mxu0 0
        %1087 = vmatpush1.bf16.msra.mxu0 0
        %1088 = vmatprep.subr.bf16.mxu0 0
        %1089 = vmatpush1.bf16.msra.mxu0 0
        %1090 = vmatprep.subr.bf16.mxu0 0
        %1091 = vmatpush1.bf16.msra.mxu0 0
        %1092 = vmatprep.subr.bf16.mxu0 0
        %1093 = vmatpush1.bf16.msra.mxu0 0
        %1094 = vmatprep.subr.bf16.mxu0 0
        %1095 = vmatpush1.bf16.msra.mxu0 0
        %1096 = vmatprep.subr.bf16.mxu0 0
        %1097 = vmatpush1.bf16.msra.mxu0 0
        %1098 = vmatprep.subr.bf16.mxu0 0
        %1099 = vmatpush1.bf16.msra.mxu0 0
        %1100 = vmatprep.subr.bf16.mxu0 0
        %1101 = vmatpush1.bf16.msra.mxu0 0
        %1102 = vmatprep.subr.bf16.mxu0 0
        %1103 = vmatpush1.bf16.msra.mxu0 0
        %1104 = vmatprep.subr.bf16.mxu0 0
        %1105 = vmatpush1.bf16.msra.mxu0 0
        %1106 = vmatprep.subr.bf16.mxu0 0
        %1107 = vmatpush1.bf16.msra.mxu0 0
        %1108 = vmatprep.mubr.bf16.mxu0 0
        %1109 = vmatmul.mubr.bf16.gmra.mrb[0].mxu0 %v1053
        %v1110 = vpop.f32.mrb[0].mxu0
        %v1111 = vadd.f32 %v1039, %v1110
        %v1112 = vpop.f32.mrb[0].mxu0
        %v1113 = vpop.f32.mrb[0].mxu0
        %v1114 = vadd.f32 %v1039, %v1113
        %v1115 = vpop.f32.mrb[0].mxu0
        %1116 = vmatprep.mubr.bf16.mxu0 0
        %1117 = vmatmul.mubr.bf16.gmra.mrb[0].mxu0 %v1056
        %v1118 = vpop.f32.mrb[0].mxu0
        %v1119 = vadd.f32 %v1039, %v1118
        %v1120 = vpop.f32.mrb[0].mxu0
        %v1121 = vpop.f32.mrb[0].mxu0
        %v1122 = vadd.f32 %v1039, %v1121
        %v1123 = vpop.f32.mrb[0].mxu0
        %1124 = vmatprep.mubr.bf16.mxu0 0
        %1125 = vmatmul.mubr.bf16.gmra.mrb[0].mxu0 %v1059
        %v1126 = vpop.f32.mrb[0].mxu0
        %v1127 = vadd.f32 %v1039, %v1126
        %v1128 = vpop.f32.mrb[0].mxu0
        %v1129 = vpop.f32.mrb[0].mxu0
        %v1130 = vadd.f32 %v1039, %v1129
        %v1131 = vpop.f32.mrb[0].mxu0
        %1132 = vmatprep.mubr.bf16.mxu0 0
        %1133 = vmatmul.mubr.bf16.gmra.mrb[0].mxu0 %v1062
        %v1134 = vpop.f32.mrb[0].mxu0
        %v1135 = vadd.f32 %v1039, %v1134
        %v1136 = vpop.f32.mrb[0].mxu0
        %v1137 = vpop.f32.mrb[0].mxu0
        %v1138 = vadd.f32 %v1039, %v1137
        %v1139 = vpop.f32.mrb[0].mxu0
        %1140 = vmatprep.mubr.bf16.mxu0 0
        %1141 = vmatmul.mubr.bf16.gmra.mrb[0].mxu0 %v1065
        %v1142 = vpop.f32.mrb[0].mxu0
        %v1143 = vadd.f32 %v1039, %v1142
        %v1144 = vpop.f32.mrb[0].mxu0
        %v1145 = vpop.f32.mrb[0].mxu0
        %v1146 = vadd.f32 %v1039, %v1145
        %v1147 = vpop.f32.mrb[0].mxu0
        %1148 = vmatprep.mubr.bf16.mxu0 0
        %1149 = vmatmul.mubr.bf16.gmra.mrb[0].mxu0 %v1068
        %v1150 = vpop.f32.mrb[0].mxu0
        %v1151 = vadd.f32 %v1039, %v1150
        %v1152 = vpop.f32.mrb[0].mxu0
        %v1153 = vpop.f32.mrb[0].mxu0
        %v1154 = vadd.f32 %v1039, %v1153
        %v1155 = vpop.f32.mrb[0].mxu0
        %1156 = vmatprep.mubr.bf16.mxu0 0
        %1157 = vmatmul.mubr.bf16.gmra.mrb[0].mxu0 %v1071
        %v1158 = vpop.f32.mrb[0].mxu0
        %v1159 = vadd.f32 %v1039, %v1158
        %v1160 = vpop.f32.mrb[0].mxu0
        %v1161 = vpop.f32.mrb[0].mxu0
        %v1162 = vadd.f32 %v1039, %v1161
        %v1163 = vpop.f32.mrb[0].mxu0
        %1164 = vmatprep.mubr.bf16.mxu0 0
        %1165 = vmatmul.mubr.bf16.gmra.mrb[0].mxu0 %v1074
        %v1166 = vpop.f32.mrb[0].mxu0
        %v1167 = vadd.f32 %v1039, %v1166
        %v1168 = vpop.f32.mrb[0].mxu0
        %v1169 = vpop.f32.mrb[0].mxu0
        %v1170 = vadd.f32 %v1039, %v1169
        %v1171 = vpop.f32.mrb[0].mxu0
        %1172 = vdwg.mxu0
        %vm1173 = vcmask 64512
        %v1174 = vsel %vm1173, %v1111, -inf
        %1175 = vmax.xlane.f32.xlu0 %v1174
        %v1176 = vpop.xlane.xlu0 %1175
        %v1177 = vsel %vm1173, %v1114, -inf
        %1178 = vmax.xlane.f32.xlu0 %v1177
        %v1179 = vpop.xlane.xlu0 %1178
        %v1180 = vsel %vm1173, %v1119, -inf
        %1181 = vmax.xlane.f32.xlu0 %v1180
        %v1182 = vpop.xlane.xlu0 %1181
        %v1183 = vsel %vm1173, %v1122, -inf
        %1184 = vmax.xlane.f32.xlu0 %v1183
        %v1185 = vpop.xlane.xlu0 %1184
        %v1186 = vsel %vm1173, %v1127, -inf
        %1187 = vmax.xlane.f32.xlu0 %v1186
        %v1188 = vpop.xlane.xlu0 %1187
        %v1189 = vsel %vm1173, %v1130, -inf
        %1190 = vmax.xlane.f32.xlu0 %v1189
        %v1191 = vpop.xlane.xlu0 %1190
        %v1192 = vsel %vm1173, %v1135, -inf
        %1193 = vmax.xlane.f32.xlu0 %v1192
        %v1194 = vpop.xlane.xlu0 %1193
        %v1195 = vsel %vm1173, %v1138, -inf
        %1196 = vmax.xlane.f32.xlu0 %v1195
        %v1197 = vpop.xlane.xlu0 %1196
        %v1198 = vsel %vm1173, %v1143, -inf
        %1199 = vmax.xlane.f32.xlu0 %v1198
        %v1200 = vpop.xlane.xlu0 %1199
        %v1201 = vsel %vm1173, %v1146, -inf
        %1202 = vmax.xlane.f32.xlu0 %v1201
        %v1203 = vpop.xlane.xlu0 %1202
        %v1204 = vsel %vm1173, %v1151, -inf
        %1205 = vmax.xlane.f32.xlu0 %v1204
        %v1206 = vpop.xlane.xlu0 %1205
        %v1207 = vsel %vm1173, %v1154, -inf
        %1208 = vmax.xlane.f32.xlu0 %v1207
        %v1209 = vpop.xlane.xlu0 %1208
        %v1210 = vsel %vm1173, %v1159, -inf
        %1211 = vmax.xlane.f32.xlu0 %v1210
        %v1212 = vpop.xlane.xlu0 %1211
        %v1213 = vsel %vm1173, %v1162, -inf
        %1214 = vmax.xlane.f32.xlu0 %v1213
        %v1215 = vpop.xlane.xlu0 %1214
        %v1216 = vsel %vm1173, %v1167, -inf
        %1217 = vmax.xlane.f32.xlu0 %v1216
        %v1218 = vpop.xlane.xlu0 %1217
        %v1219 = vsel %vm1173, %v1170, -inf
        %1220 = vmax.xlane.f32.xlu0 %v1219
        %v1221 = vpop.xlane.xlu0 %1220
        %v1222 = vsub.f32 %v1111, %v1176
        %v1223 = vsub.f32 %v1114, %v1179
        %v1224 = vsub.f32 %v1119, %v1182
        %v1225 = vsub.f32 %v1122, %v1185
        %v1226 = vsub.f32 %v1127, %v1188
        %v1227 = vsub.f32 %v1130, %v1191
        %v1228 = vsub.f32 %v1135, %v1194
        %v1229 = vsub.f32 %v1138, %v1197
        %v1230 = vsub.f32 %v1143, %v1200
        %v1231 = vsub.f32 %v1146, %v1203
        %v1232 = vsub.f32 %v1151, %v1206
        %v1233 = vsub.f32 %v1154, %v1209
        %v1234 = vsub.f32 %v1159, %v1212
        %v1235 = vsub.f32 %v1162, %v1215
        %v1236 = vsub.f32 %v1167, %v1218
        %v1237 = vsub.f32 %v1170, %v1221
        %v1238 = vmul.f32 %v1222, 1.442695
        %v1239 = vpow.pop %v1238
        %v1240 = vmul.f32 %v1223, 1.442695
        %v1241 = vpow.pop %v1240
        %v1242 = vmul.f32 %v1224, 1.442695
        %v1243 = vpow.pop %v1242
        %v1244 = vmul.f32 %v1225, 1.442695
        %v1245 = vpow.pop %v1244
        %v1246 = vmul.f32 %v1226, 1.442695
        %v1247 = vpow.pop %v1246
        %v1248 = vmul.f32 %v1227, 1.442695
        %v1249 = vpow.pop %v1248
        %v1250 = vmul.f32 %v1228, 1.442695
        %v1251 = vpow.pop %v1250
        %v1252 = vmul.f32 %v1229, 1.442695
        %v1253 = vpow.pop %v1252
        %v1254 = vmul.f32 %v1230, 1.442695
        %v1255 = vpow.pop %v1254
        %v1256 = vmul.f32 %v1231, 1.442695
        %v1257 = vpow.pop %v1256
        %v1258 = vmul.f32 %v1232, 1.442695
        %v1259 = vpow.pop %v1258
        %v1260 = vmul.f32 %v1233, 1.442695
        %v1261 = vpow.pop %v1260
        %v1262 = vmul.f32 %v1234, 1.442695
        %v1263 = vpow.pop %v1262
        %v1264 = vmul.f32 %v1235, 1.442695
        %v1265 = vpow.pop %v1264
        %v1266 = vmul.f32 %v1236, 1.442695
        %v1267 = vpow.pop %v1266
        %v1268 = vmul.f32 %v1237, 1.442695
        %v1269 = vpow.pop %v1268
        %v1270 = vsel %vm1173, %v1239, 0.0
        %1271 = vadd.xlane.f32.xlu0 %v1270
        %v1272 = vpop.xlane.xlu0 %1271
        %v1273 = vsel %vm1173, %v1241, 0.0
        %1274 = vadd.xlane.f32.xlu0 %v1273
        %v1275 = vpop.xlane.xlu0 %1274
        %v1276 = vsel %vm1173, %v1243, 0.0
        %1277 = vadd.xlane.f32.xlu0 %v1276
        %v1278 = vpop.xlane.xlu0 %1277
        %v1279 = vsel %vm1173, %v1245, 0.0
        %1280 = vadd.xlane.f32.xlu0 %v1279
        %v1281 = vpop.xlane.xlu0 %1280
        %v1282 = vsel %vm1173, %v1247, 0.0
        %1283 = vadd.xlane.f32.xlu0 %v1282
        %v1284 = vpop.xlane.xlu0 %1283
        %v1285 = vsel %vm1173, %v1249, 0.0
        %1286 = vadd.xlane.f32.xlu0 %v1285
        %v1287 = vpop.xlane.xlu0 %1286
        %v1288 = vsel %vm1173, %v1251, 0.0
        %1289 = vadd.xlane.f32.xlu0 %v1288
        %v1290 = vpop.xlane.xlu0 %1289
        %v1291 = vsel %vm1173, %v1253, 0.0
        %1292 = vadd.xlane.f32.xlu0 %v1291
        %v1293 = vpop.xlane.xlu0 %1292
        %v1294 = vsel %vm1173, %v1255, 0.0
        %1295 = vadd.xlane.f32.xlu0 %v1294
        %v1296 = vpop.xlane.xlu0 %1295
        %v1297 = vsel %vm1173, %v1257, 0.0
        %1298 = vadd.xlane.f32.xlu0 %v1297
        %v1299 = vpop.xlane.xlu0 %1298
        %v1300 = vsel %vm1173, %v1259, 0.0
        %1301 = vadd.xlane.f32.xlu0 %v1300
        %v1302 = vpop.xlane.xlu0 %1301
        %v1303 = vsel %vm1173, %v1261, 0.0
        %1304 = vadd.xlane.f32.xlu0 %v1303
        %v1305 = vpop.xlane.xlu0 %1304
        %v1306 = vsel %vm1173, %v1263, 0.0
        %1307 = vadd.xlane.f32.xlu0 %v1306
        %v1308 = vpop.xlane.xlu0 %1307
        %v1309 = vsel %vm1173, %v1265, 0.0
        %1310 = vadd.xlane.f32.xlu0 %v1309
        %v1311 = vpop.xlane.xlu0 %1310
        %v1312 = vsel %vm1173, %v1267, 0.0
        %1313 = vadd.xlane.f32.xlu0 %v1312
        %v1314 = vpop.xlane.xlu0 %1313
        %v1315 = vsel %vm1173, %v1269, 0.0
        %1316 = vadd.xlane.f32.xlu0 %v1315
        %v1317 = vpop.xlane.xlu0 %1316
        %v1318 = vrcp.pop %v1272
        %v1319 = vmul.f32 %v1239, %v1318
        %v1320 = vrcp.pop %v1275
        %v1321 = vmul.f32 %v1241, %v1320
        %v1322 = vrcp.pop %v1278
        %v1323 = vmul.f32 %v1243, %v1322
        %v1324 = vrcp.pop %v1281
        %v1325 = vmul.f32 %v1245, %v1324
        %v1326 = vrcp.pop %v1284
        %v1327 = vmul.f32 %v1247, %v1326
        %v1328 = vrcp.pop %v1287
        %v1329 = vmul.f32 %v1249, %v1328
        %v1330 = vrcp.pop %v1290
        %v1331 = vmul.f32 %v1251, %v1330
        %v1332 = vrcp.pop %v1293
        %v1333 = vmul.f32 %v1253, %v1332
        %v1334 = vrcp.pop %v1296
        %v1335 = vmul.f32 %v1255, %v1334
        %v1336 = vrcp.pop %v1299
        %v1337 = vmul.f32 %v1257, %v1336
        %v1338 = vrcp.pop %v1302
        %v1339 = vmul.f32 %v1259, %v1338
        %v1340 = vrcp.pop %v1305
        %v1341 = vmul.f32 %v1261, %v1340
        %v1342 = vrcp.pop %v1308
        %v1343 = vmul.f32 %v1263, %v1342
        %v1344 = vrcp.pop %v1311
        %v1345 = vmul.f32 %v1265, %v1344
        %v1346 = vrcp.pop %v1314
        %v1347 = vmul.f32 %v1267, %v1346
        %v1348 = vrcp.pop %v1317
        %v1349 = vmul.f32 %v1269, %v1348
        %1350 = vst.msk [vmem:[%s280] sm:$0xff] %vm1173, %v1319
        %1351 = vst.msk [vmem:[%s280 + $0x8] sm:$0xff] %vm1173, %v1321
        %1352 = vst.msk [vmem:[%s280 + $0x10] sm:$0xff] %vm1173, %v1323
        %1353 = vst.msk [vmem:[%s280 + $0x18] sm:$0xff] %vm1173, %v1325
        %1354 = vst.msk [vmem:[%s280 + $0x20] sm:$0xff] %vm1173, %v1327
        %1355 = vst.msk [vmem:[%s280 + $0x28] sm:$0xff] %vm1173, %v1329
        %1356 = vst.msk [vmem:[%s280 + $0x30] sm:$0xff] %vm1173, %v1331
        %1357 = vst.msk [vmem:[%s280 + $0x38] sm:$0xff] %vm1173, %v1333
        %1358 = vst.msk [vmem:[%s280 + $0x40] sm:$0xff] %vm1173, %v1335
        %1359 = vst.msk [vmem:[%s280 + $0x48] sm:$0xff] %vm1173, %v1337
        %1360 = vst.msk [vmem:[%s280 + $0x50] sm:$0xff] %vm1173, %v1339
        %1361 = vst.msk [vmem:[%s280 + $0x58] sm:$0xff] %vm1173, %v1341
        %1362 = vst.msk [vmem:[%s280 + $0x60] sm:$0xff] %vm1173, %v1343
        %1363 = vst.msk [vmem:[%s280 + $0x68] sm:$0xff] %vm1173, %v1345
        %1364 = vst.msk [vmem:[%s280 + $0x70] sm:$0xff] %vm1173, %v1347
        %1365 = vst.msk [vmem:[%s280 + $0x78] sm:$0xff] %vm1173, %v1349
        %s1366 = sand.u32 %s178, 1
        %s1367 = sand.u32 %s178, 1
        %s1368 = smul.addr %s1367, 128
        %s1369 = scalar_lea.vmem [#allocation2], %s1368
        // Predicated region
        $region49: #{_lambda_.1} parent=47 // pred_check
          %p1370 = pneg %p188
        $region50: #{_lambda_.1} parent=47 // pred_check_branch
          %1372 = sbr.rel (%p1370) target = $region52
        $region51: #{_lambda_.1} parent=47 // pred_region
          %s1373 = smul.u32 16, %s18
          %s1374 = ssub.s32 63, %s1373
          %p1375 = scmp.lt.s32.totalorder %s1374, 16
          %s1376 = scalar_select %p1375, %s1374, 16
          %s1377 = smul.u32 128, %s1376
          %p1378 = scmp.ne.s32.totalorder 0, %s1377
          %s1379 = smul.addr %s1373, 8
          %s1380 = scalar_lea.vmem %s7, %s1379
          // Predicated region
          $region53: #{_lambda_.1} parent=51 // pred_check
            %p1381 = pneg %p1378
          $region54: #{_lambda_.1} parent=51 // pred_check_branch
            %1383 = sbr.rel (%p1381) target = $region56
          $region55: #{_lambda_.1} parent=51 // pred_region
            // Predicated region
            $region57: #{_lambda_.1} parent=55 // pred_check
              _
            $region58: #{_lambda_.1} parent=55 // pred_check_branch
              %1385 = sbr.rel (0) target = $region60
            $region59: #{_lambda_.1} parent=55 // pred_region
              // Predicated region
              $region79: #{_lambda_.1} parent=59 // pred_check
                _
              $region80: #{_lambda_.1} parent=59 // pred_check_branch
                %1464 = sbr.rel (0) target = $region82
              $region81: #{_lambda_.1} parent=59 // pred_region
                %s1465 = sshrl.u32 %s1376, 4
                // While loop
                $region83: #{_lambda_.1} parent=81 // loop_pre_header
                  _
                $region84: #{_lambda_.1} parent=81 // loop_header
                  %s1467 = sphi 0, %s1469
                  %p1468 = scmp.ge.s32.totalorder %s1467, %s1465
                  %s1472 = sphi 0, %s1509
                  %s1473 = sphi %s1369, %s1512
                  %s1474 = sphi %s1380, %s1513
                $region85: #{_lambda_.1} parent=81 // loop_header_branch
                  %1471 = sbr.rel (%p1468) target = $region89
                $region86: #{_lambda_.1} parent=81 // loop_body
                  %v1475 = vld [vmem:[%s1473] sm:$0xff]
                  %1476 = vst [vmem:[%s1474] sm:$0xff] %v1475
                  %v1477 = vld [vmem:[%s1473 + $0x8] sm:$0xff]
                  %1478 = vst [vmem:[%s1474 + $0x8] sm:$0xff] %v1477
                  %v1479 = vld [vmem:[%s1473 + $0x10] sm:$0xff]
                  %1480 = vst [vmem:[%s1474 + $0x10] sm:$0xff] %v1479
                  %v1481 = vld [vmem:[%s1473 + $0x18] sm:$0xff]
                  %1482 = vst [vmem:[%s1474 + $0x18] sm:$0xff] %v1481
                  %v1483 = vld [vmem:[%s1473 + $0x20] sm:$0xff]
                  %1484 = vst [vmem:[%s1474 + $0x20] sm:$0xff] %v1483
                  %v1485 = vld [vmem:[%s1473 + $0x28] sm:$0xff]
                  %1486 = vst [vmem:[%s1474 + $0x28] sm:$0xff] %v1485
                  %v1487 = vld [vmem:[%s1473 + $0x30] sm:$0xff]
                  %1488 = vst [vmem:[%s1474 + $0x30] sm:$0xff] %v1487
                  %v1489 = vld [vmem:[%s1473 + $0x38] sm:$0xff]
                  %1490 = vst [vmem:[%s1474 + $0x38] sm:$0xff] %v1489
                  %v1491 = vld [vmem:[%s1473 + $0x40] sm:$0xff]
                  %1492 = vst [vmem:[%s1474 + $0x40] sm:$0xff] %v1491
                  %v1493 = vld [vmem:[%s1473 + $0x48] sm:$0xff]
                  %1494 = vst [vmem:[%s1474 + $0x48] sm:$0xff] %v1493
                  %v1495 = vld [vmem:[%s1473 + $0x50] sm:$0xff]
                  %1496 = vst [vmem:[%s1474 + $0x50] sm:$0xff] %v1495
                  %v1497 = vld [vmem:[%s1473 + $0x58] sm:$0xff]
                  %1498 = vst [vmem:[%s1474 + $0x58] sm:$0xff] %v1497
                  %v1499 = vld [vmem:[%s1473 + $0x60] sm:$0xff]
                  %1500 = vst [vmem:[%s1474 + $0x60] sm:$0xff] %v1499
                  %v1501 = vld [vmem:[%s1473 + $0x68] sm:$0xff]
                  %1502 = vst [vmem:[%s1474 + $0x68] sm:$0xff] %v1501
                  %v1503 = vld [vmem:[%s1473 + $0x70] sm:$0xff]
                  %1504 = vst [vmem:[%s1474 + $0x70] sm:$0xff] %v1503
                  %v1505 = vld [vmem:[%s1473 + $0x78] sm:$0xff]
                  %1506 = vst [vmem:[%s1474 + $0x78] sm:$0xff] %v1505
                  %s1507 = sadd.s32 1, %s1472
                  %p1508 = scmp.ge.s32.totalorder %s1507, %s1465
                  %s1509 = scalar_select %p1508, 0, %s1507
                  %s1510 = smul.u32 %s1509, 128
                  %s1511 = smul.u32 %s1509, 128
                  %s1512 = scalar_lea.vmem %s1369, %s1510 [#allocation2]
                  %s1513 = scalar_lea.vmem %s1380, %s1511
                $region87: #{_lambda_.1} parent=81 // loop_footer
                  %s1469 = sadd.s32 %s1467, 1
                $region88: #{_lambda_.1} parent=81 // loop_footer_branch
                  %1466 = sbr.rel target = $region84
                $region89: #{_lambda_.1} parent=81 // loop_exit
                  _
                %s1514 = sshrl.u32 %s1376, 4
                %s1515 = sand.u32 %s1376, 15
                %s1516 = smul.u32 %s1514, 16
                %s1517 = smul.u32 8, %s1516
                %s1518 = scalar_lea.vmem %s1369, %s1517 [#allocation2]
                %s1519 = smul.u32 8, %s1516
                %s1520 = scalar_lea.vmem %s1380, %s1519
                // While loop
                $region90: #{_lambda_.1} parent=81 // loop_pre_header
                  _
                $region91: #{_lambda_.1} parent=81 // loop_header
                  %s1522 = sphi 0, %s1524
                  %p1523 = scmp.ge.s32.totalorder %s1522, %s1515
                  %s1527 = sphi 0, %s1534
                  %s1528 = sphi %s1518, %s1537
                  %s1529 = sphi %s1520, %s1538
                $region92: #{_lambda_.1} parent=81 // loop_header_branch
                  %1526 = sbr.rel (%p1523) target = $region96
                $region93: #{_lambda_.1} parent=81 // loop_body
                  %v1530 = vld [vmem:[%s1528] sm:$0xff]
                  %1531 = vst [vmem:[%s1529] sm:$0xff] %v1530
                  %s1532 = sadd.s32 1, %s1527
                  %p1533 = scmp.ge.s32.totalorder %s1532, %s1515
                  %s1534 = scalar_select %p1533, 0, %s1532
                  %s1535 = smul.u32 %s1534, 8
                  %s1536 = smul.u32 %s1534, 8
                  %s1537 = scalar_lea.vmem %s1518, %s1535 [#allocation2]
                  %s1538 = scalar_lea.vmem %s1520, %s1536
                $region94: #{_lambda_.1} parent=81 // loop_footer
                  %s1524 = sadd.s32 %s1522, 1
                $region95: #{_lambda_.1} parent=81 // loop_footer_branch
                  %1521 = sbr.rel target = $region91
                $region96: #{_lambda_.1} parent=81 // loop_exit
                  _
              $region82: #{_lambda_.1} parent=59 // pred_fallthru
                _
              // Predicated region
              $region97: #{_lambda_.1} parent=59 // pred_check
                _
              $region98: #{_lambda_.1} parent=59 // pred_check_branch
                %1540 = sbr.rel target = $region100
              $region99: #{_lambda_.1} parent=59 // pred_region
                _
              $region100: #{_lambda_.1} parent=59 // pred_fallthru
                _
            $region60: #{_lambda_.1} parent=55 // pred_fallthru
              _
            // Predicated region
            $region61: #{_lambda_.1} parent=55 // pred_check
              _
            $region62: #{_lambda_.1} parent=55 // pred_check_branch
              %1387 = sbr.rel target = $region64
            $region63: #{_lambda_.1} parent=55 // pred_region
              %s1389 = sshrl.u32 %s1376, 4
              // While loop
              $region65: #{_lambda_.1} parent=63 // loop_pre_header
                _
              $region66: #{_lambda_.1} parent=63 // loop_header
                %s1391 = sphi 0, %s1393
                %p1392 = scmp.ge.s32.totalorder %s1391, %s1389
                %s1396 = sphi 0, %s1433
                %s1397 = sphi %s1369, %s1436
                %s1398 = sphi %s1380, %s1437
              $region67: #{_lambda_.1} parent=63 // loop_header_branch
                %1395 = sbr.rel (%p1392) target = $region71
              $region68: #{_lambda_.1} parent=63 // loop_body
                %v1399 = vld [vmem:[%s1397] sm:$0xff]
                %1400 = vst [vmem:[%s1398] sm:$0xff] %v1399
                %v1401 = vld [vmem:[%s1397 + $0x8] sm:$0xff]
                %1402 = vst [vmem:[%s1398 + $0x8] sm:$0xff] %v1401
                %v1403 = vld [vmem:[%s1397 + $0x10] sm:$0xff]
                %1404 = vst [vmem:[%s1398 + $0x10] sm:$0xff] %v1403
                %v1405 = vld [vmem:[%s1397 + $0x18] sm:$0xff]
                %1406 = vst [vmem:[%s1398 + $0x18] sm:$0xff] %v1405
                %v1407 = vld [vmem:[%s1397 + $0x20] sm:$0xff]
                %1408 = vst [vmem:[%s1398 + $0x20] sm:$0xff] %v1407
                %v1409 = vld [vmem:[%s1397 + $0x28] sm:$0xff]
                %1410 = vst [vmem:[%s1398 + $0x28] sm:$0xff] %v1409
                %v1411 = vld [vmem:[%s1397 + $0x30] sm:$0xff]
                %1412 = vst [vmem:[%s1398 + $0x30] sm:$0xff] %v1411
                %v1413 = vld [vmem:[%s1397 + $0x38] sm:$0xff]
                %1414 = vst [vmem:[%s1398 + $0x38] sm:$0xff] %v1413
                %v1415 = vld [vmem:[%s1397 + $0x40] sm:$0xff]
                %1416 = vst [vmem:[%s1398 + $0x40] sm:$0xff] %v1415
                %v1417 = vld [vmem:[%s1397 + $0x48] sm:$0xff]
                %1418 = vst [vmem:[%s1398 + $0x48] sm:$0xff] %v1417
                %v1419 = vld [vmem:[%s1397 + $0x50] sm:$0xff]
                %1420 = vst [vmem:[%s1398 + $0x50] sm:$0xff] %v1419
                %v1421 = vld [vmem:[%s1397 + $0x58] sm:$0xff]
                %1422 = vst [vmem:[%s1398 + $0x58] sm:$0xff] %v1421
                %v1423 = vld [vmem:[%s1397 + $0x60] sm:$0xff]
                %1424 = vst [vmem:[%s1398 + $0x60] sm:$0xff] %v1423
                %v1425 = vld [vmem:[%s1397 + $0x68] sm:$0xff]
                %1426 = vst [vmem:[%s1398 + $0x68] sm:$0xff] %v1425
                %v1427 = vld [vmem:[%s1397 + $0x70] sm:$0xff]
                %1428 = vst [vmem:[%s1398 + $0x70] sm:$0xff] %v1427
                %v1429 = vld [vmem:[%s1397 + $0x78] sm:$0xff]
                %1430 = vst [vmem:[%s1398 + $0x78] sm:$0xff] %v1429
                %s1431 = sadd.s32 1, %s1396
                %p1432 = scmp.ge.s32.totalorder %s1431, %s1389
                %s1433 = scalar_select %p1432, 0, %s1431
                %s1434 = smul.u32 %s1433, 128
                %s1435 = smul.u32 %s1433, 128
                %s1436 = scalar_lea.vmem %s1369, %s1434 [#allocation2]
                %s1437 = scalar_lea.vmem %s1380, %s1435
              $region69: #{_lambda_.1} parent=63 // loop_footer
                %s1393 = sadd.s32 %s1391, 1
              $region70: #{_lambda_.1} parent=63 // loop_footer_branch
                %1390 = sbr.rel target = $region66
              $region71: #{_lambda_.1} parent=63 // loop_exit
                _
              %s1438 = sshrl.u32 %s1376, 4
              %s1439 = sand.u32 %s1376, 15
              %s1440 = smul.u32 %s1438, 16
              %s1441 = smul.u32 8, %s1440
              %s1442 = scalar_lea.vmem %s1369, %s1441 [#allocation2]
              %s1443 = smul.u32 8, %s1440
              %s1444 = scalar_lea.vmem %s1380, %s1443
              // While loop
              $region72: #{_lambda_.1} parent=63 // loop_pre_header
                _
              $region73: #{_lambda_.1} parent=63 // loop_header
                %s1446 = sphi 0, %s1448
                %p1447 = scmp.ge.s32.totalorder %s1446, %s1439
                %s1451 = sphi 0, %s1458
                %s1452 = sphi %s1442, %s1461
                %s1453 = sphi %s1444, %s1462
              $region74: #{_lambda_.1} parent=63 // loop_header_branch
                %1450 = sbr.rel (%p1447) target = $region78
              $region75: #{_lambda_.1} parent=63 // loop_body
                %v1454 = vld [vmem:[%s1452] sm:$0xff]
                %1455 = vst [vmem:[%s1453] sm:$0xff] %v1454
                %s1456 = sadd.s32 1, %s1451
                %p1457 = scmp.ge.s32.totalorder %s1456, %s1439
                %s1458 = scalar_select %p1457, 0, %s1456
                %s1459 = smul.u32 %s1458, 8
                %s1460 = smul.u32 %s1458, 8
                %s1461 = scalar_lea.vmem %s1442, %s1459 [#allocation2]
                %s1462 = scalar_lea.vmem %s1444, %s1460
              $region76: #{_lambda_.1} parent=63 // loop_footer
                %s1448 = sadd.s32 %s1446, 1
              $region77: #{_lambda_.1} parent=63 // loop_footer_branch
                %1445 = sbr.rel target = $region73
              $region78: #{_lambda_.1} parent=63 // loop_exit
                _
            $region64: #{_lambda_.1} parent=55 // pred_fallthru
              _
          $region56: #{_lambda_.1} parent=51 // pred_fallthru
            _
          %1541 = vnop
        $region52: #{_lambda_.1} parent=47 // pred_fallthru
          _
      $region48: #{_lambda_.1} parent=5 // pred_fallthru
        _
      %p1542 = scmp.le.s32.totalorder 2, %s13
      // Predicated region
      $region101: #{_lambda_.1} parent=5 // pred_check
        %p1543 = pneg %p1542
      $region102: #{_lambda_.1} parent=5 // pred_check_branch
        %1545 = sbr.rel (%p1543) target = $region104
      $region103: #{_lambda_.1} parent=5 // pred_region
        %s1546 = ssub.s32 %s13, 2
        // Predicated region
        $region105: #{_lambda_.1} parent=103 // pred_check
          %p1547 = pneg %p194
        $region106: #{_lambda_.1} parent=103 // pred_check_branch
          %1549 = sbr.rel (%p1547) target = $region108
        $region107: #{_lambda_.1} parent=103 // pred_region
          %s1550 = sand.u32 %s179, 1
          %s1551 = sand.u32 %s179, 1
          %s1552 = smul.addr %s1551, 128
          %s1553 = scalar_lea.vmem [#allocation2], %s1552
        $region108: #{_lambda_.1} parent=103 // pred_fallthru
          _
      $region104: #{_lambda_.1} parent=5 // pred_fallthru
        _
    $region6: #{_lambda_.1} parent=1 // loop_footer
      %s17 = sadd.s32 1, %s13
    $region7: #{_lambda_.1} parent=1 // loop_footer_branch
      %12 = sbr.rel target = $region3
    $region8: #{_lambda_.1} parent=1 // loop_exit
      _

</llo_original>
